<compile_context>
chip_gen: v7x
topology: tpu7x:2x2x1
jax: 0.10.0
libtpu: 0.0.40
codegen_flags: <defaults>
</compile_context>

<pallas_src>
import functools

import jax
import jax.numpy as jnp
from jax.experimental import pallas as pl
from jax.experimental.pallas import tpu as pltpu


_LEAKY_SLOPE = 0.01  # torch.nn.LeakyReLU default negative_slope


def _round_up(x, m):
    return (x + m - 1) // m * m


def _linear_rows(params_ref, xs, w_off, b_off, in_dim, out_dim, act):
    """One Linear(+LeakyReLU) layer as unrolled scalar*vector FMAs on the VPU.

    xs: list of `in_dim` arrays, each (8, L), lane-dense.
    Weights stored (out, in) row-major starting at params_ref[w_off]; bias at b_off.
    """
    ys = []
    for o in range(out_dim):
        y = xs[0] * params_ref[w_off + o * in_dim]
        for k in range(1, in_dim):
            y = y + xs[k] * params_ref[w_off + o * in_dim + k]
        y = y + params_ref[b_off + o]
        if act:
            # LeakyReLU: for 0 < slope < 1, max(y, slope*y) == where(y>0, y, slope*y).
            y = jnp.maximum(y, _LEAKY_SLOPE * y)
        ys.append(y)
    return ys


def autoencoder_kernel(layers, params_ref, x_ref, tau_ref, cmd_ref):
    # Inputs: full (8, L) slabs per feature row -> unmasked, lane-dense loads.
    in0 = layers[0][2]
    h = [x_ref[k] for k in range(in0)]
    cmd_rows = None
    for li, (w_off, b_off, in_dim, out_dim, act) in enumerate(layers):
        h = _linear_rows(params_ref, h, w_off, b_off, in_dim, out_dim, act)
        if li == 2:                       # encoder output == thruster commands
            cmd_rows = h
    # Lane-dense, unmasked stores of full (8, L) slabs.
    for o, row in enumerate(cmd_rows):
        cmd_ref[o] = row
    for o, row in enumerate(h):
        tau_ref[o] = row


_ACTS = (True, True, False, True, True, False)  # LeakyReLU after layers 1,2,4,5


def init_params(key, input_dim=3, thruster_output_dim=5):
    """PyTorch-Linear-style init U(-1/sqrt(fan_in), +1/sqrt(fan_in)).
    Weights stored (in_dim, out_dim) so the reference computes y = x @ W + b."""
    dims = [(input_dim, 4), (4, 5), (5, thruster_output_dim),
            (thruster_output_dim, 5), (5, 4), (4, input_dim)]
    params = []
    for fan_in, fan_out in dims:
        key, kw, kb = jax.random.split(key, 3)
        bound = 1.0 / float(jnp.sqrt(jnp.float32(fan_in)))
        w = jax.random.uniform(kw, (fan_in, fan_out), jnp.float32, -bound, bound)
        b = jax.random.uniform(kb, (fan_out,), jnp.float32, -bound, bound)
        params.append((w, b))
    return params


def pack_params(params):
    """Pack all weights/biases into one flat f32 slab (for SMEM) + static layer table."""
    flat, layers, off = [], [], 0
    for (w, b), act in zip(params, _ACTS):
        in_dim, out_dim = w.shape
        flat.append(jnp.transpose(w).reshape(-1))   # (out, in) row-major
        w_off = off
        off += in_dim * out_dim
        flat.append(b.reshape(-1))
        b_off = off
        off += out_dim
        layers.append((w_off, b_off, in_dim, out_dim, act))
    return jnp.concatenate(flat), tuple(layers)


def autoencoder_forward(tau_desired, params, *, max_rows_per_tile=32768):
    """tau_desired: (N, input_dim) float32. Returns (tau_pred (N,3), thruster_commands (N,5))."""
    N, input_dim = tau_desired.shape
    thr_dim = params[2][0].shape[1]
    params_flat, layers = pack_params(params)

    # Rows per grid step: large (amortize per-step overhead), multiple of 8*128=1024
    # so blocks are (8,128)-aligned, capped, and grid >= 2 when N allows (v7x megacore).
    tm = int(min(max_rows_per_tile, max(1024, _round_up(N, 2048) // 2)))
    n_pad = _round_up(N, tm)
    grid = n_pad // tm
    lanes = tm // 8

    x = tau_desired.astype(jnp.float32)
    if n_pad != N:
        x = jnp.pad(x, ((0, n_pad - N), (0, 0)))
    # (N,3) -> (3, 8, N/8): batch spread over sublanes+lanes -> fully dense vregs.
    x3 = jnp.transpose(x).reshape(input_dim, 8, n_pad // 8)

    flops_per_row = sum(2 * l[2] * l[3] for l in layers)
    cost = pl.CostEstimate(
        flops=flops_per_row * n_pad,
        transcendentals=0,
        bytes_accessed=n_pad * (input_dim * 2 + thr_dim) * 4 + int(params_flat.size) * 4,
    )

    tau3, cmd3 = pl.pallas_call(
        functools.partial(autoencoder_kernel, layers),
        out_shape=(
            jax.ShapeDtypeStruct((input_dim, 8, n_pad // 8), jnp.float32),  # tau_pred
            jax.ShapeDtypeStruct((thr_dim, 8, n_pad // 8), jnp.float32),    # commands
        ),
        grid_spec=pltpu.PrefetchScalarGridSpec(
            num_scalar_prefetch=0,
            grid=(grid,),
            in_specs=[
                pl.BlockSpec(memory_space=pltpu.MemorySpace.SMEM),          # packed params
                pl.BlockSpec((input_dim, 8, lanes), lambda i: (0, 0, i)),   # x tile
            ],
            out_specs=[
                pl.BlockSpec((input_dim, 8, lanes), lambda i: (0, 0, i)),
                pl.BlockSpec((thr_dim, 8, lanes), lambda i: (0, 0, i)),
            ],
        ),
        compiler_params=pltpu.CompilerParams(dimension_semantics=("parallel",)),
        cost_estimate=cost,
    )(params_flat, x3)

    tau_pred = jnp.transpose(tau3.reshape(input_dim, n_pad))[:N]
    commands = jnp.transpose(cmd3.reshape(thr_dim, n_pad))[:N]
    return tau_pred, commands


def autoencoder_ref(tau_desired, params):
    """Pure-JAX reference of the PyTorch forward pass."""
    def lrelu(v):
        return jnp.where(v > 0, v, _LEAKY_SLOPE * v)
    (w1, b1), (w2, b2), (w3, b3), (w4, b4), (w5, b5), (w6, b6) = params
    h = lrelu(tau_desired @ w1 + b1)
    h = lrelu(h @ w2 + b2)
    cmd = h @ w3 + b3
    h = lrelu(cmd @ w4 + b4)
    h = lrelu(h @ w5 + b5)
    tau = h @ w6 + b6
    return tau, cmd


if __name__ == "__main__":
    key = jax.random.PRNGKey(0)
    key, kparam, kx = jax.random.split(key, 3)
    params = init_params(kparam, input_dim=3, thruster_output_dim=5)

    # N = 2048 -> grid of 2 tiles of 1024 rows each (shards across v7x's 2 TCs).
    N = 2048
    tau_desired = jax.random.uniform(kx, (N, 3), jnp.float32, -1000.0, 1000.0)

    tau_pred, thruster_commands = autoencoder_forward(tau_desired, params)
    tau_pred = jax.block_until_ready(tau_pred)
    thruster_commands = jax.block_until_ready(thruster_commands)

    tau_ref, cmd_ref = autoencoder_ref(tau_desired, params)
    assert tau_pred.shape == (N, 3) and thruster_commands.shape == (N, 5)
    assert jnp.allclose(thruster_commands, cmd_ref, atol=5e-2, rtol=1e-4), \
        float(jnp.max(jnp.abs(thruster_commands - cmd_ref)))
    assert jnp.allclose(tau_pred, tau_ref, atol=5e-2, rtol=1e-4), \
        float(jnp.max(jnp.abs(tau_pred - tau_ref)))
    print("KERNEL_OK")
</pallas_src>

<mosaic_0001>
module attributes {stable_mosaic.version = 11 : i64} {
  func.func @autoencoder_kernel(%arg0: i32, %arg1: memref<140xf32, #tpu.memory_space<smem>>, %arg2: memref<3x8x128xf32, #tpu.memory_space<vmem>>, %arg3: memref<3x8x128xf32, #tpu.memory_space<vmem>>, %arg4: memref<5x8x128xf32, #tpu.memory_space<vmem>>) attributes {dimension_semantics = [#tpu.dimension_semantics<parallel>], iteration_bounds = array<i64: 2>, scalar_prefetch = 0 : i64, scratch_operands = 0 : i64, tpu.core_type = #tpu.core_type<tc>, window_params = [{transform_indices = @transform_0, window_bounds = array<i64: 140>}, {transform_indices = @transform_1, window_bounds = array<i64: 3, 8, 128>}, {transform_indices = @transform_2, window_bounds = array<i64: 3, 8, 128>}, {transform_indices = @transform_3, window_bounds = array<i64: 5, 8, 128>}]} {
    %c0 = arith.constant 0 : index
    %c0_0 = arith.constant 0 : index
    %c0_1 = arith.constant 0 : index
    %0 = vector.load %arg2[%c0, %c0_0, %c0_1] : memref<3x8x128xf32, #tpu.memory_space<vmem>>, vector<1x8x128xf32>
    %1 = vector.shape_cast %0 : vector<1x8x128xf32> to vector<8x128xf32>
    %c1 = arith.constant 1 : index
    %c0_2 = arith.constant 0 : index
    %c0_3 = arith.constant 0 : index
    %2 = vector.load %arg2[%c1, %c0_2, %c0_3] : memref<3x8x128xf32, #tpu.memory_space<vmem>>, vector<1x8x128xf32>
    %3 = vector.shape_cast %2 : vector<1x8x128xf32> to vector<8x128xf32>
    %c2 = arith.constant 2 : index
    %c0_4 = arith.constant 0 : index
    %c0_5 = arith.constant 0 : index
    %4 = vector.load %arg2[%c2, %c0_4, %c0_5] : memref<3x8x128xf32, #tpu.memory_space<vmem>>, vector<1x8x128xf32>
    %5 = vector.shape_cast %4 : vector<1x8x128xf32> to vector<8x128xf32>
    %c0_6 = arith.constant 0 : index
    %6 = memref.load %arg1[%c0_6] : memref<140xf32, #tpu.memory_space<smem>>
    %7 = vector.broadcast %6 : f32 to vector<8x128xf32>
    %8 = arith.mulf %1, %7 : vector<8x128xf32>
    %c1_7 = arith.constant 1 : index
    %9 = memref.load %arg1[%c1_7] : memref<140xf32, #tpu.memory_space<smem>>
    %10 = vector.broadcast %9 : f32 to vector<8x128xf32>
    %11 = arith.mulf %3, %10 : vector<8x128xf32>
    %12 = arith.addf %8, %11 : vector<8x128xf32>
    %c2_8 = arith.constant 2 : index
    %13 = memref.load %arg1[%c2_8] : memref<140xf32, #tpu.memory_space<smem>>
    %14 = vector.broadcast %13 : f32 to vector<8x128xf32>
    %15 = arith.mulf %5, %14 : vector<8x128xf32>
    %16 = arith.addf %12, %15 : vector<8x128xf32>
    %c12 = arith.constant 12 : index
    %17 = memref.load %arg1[%c12] : memref<140xf32, #tpu.memory_space<smem>>
    %18 = vector.broadcast %17 : f32 to vector<8x128xf32>
    %19 = arith.addf %16, %18 : vector<8x128xf32>
    %cst = arith.constant 0.00999999977 : f32
    %20 = vector.broadcast %cst : f32 to vector<8x128xf32>
    %21 = arith.mulf %20, %19 : vector<8x128xf32>
    %22 = arith.maximumf %19, %21 : vector<8x128xf32>
    %c3 = arith.constant 3 : index
    %23 = memref.load %arg1[%c3] : memref<140xf32, #tpu.memory_space<smem>>
    %24 = vector.broadcast %23 : f32 to vector<8x128xf32>
    %25 = arith.mulf %1, %24 : vector<8x128xf32>
    %c4 = arith.constant 4 : index
    %26 = memref.load %arg1[%c4] : memref<140xf32, #tpu.memory_space<smem>>
    %27 = vector.broadcast %26 : f32 to vector<8x128xf32>
    %28 = arith.mulf %3, %27 : vector<8x128xf32>
    %29 = arith.addf %25, %28 : vector<8x128xf32>
    %c5 = arith.constant 5 : index
    %30 = memref.load %arg1[%c5] : memref<140xf32, #tpu.memory_space<smem>>
    %31 = vector.broadcast %30 : f32 to vector<8x128xf32>
    %32 = arith.mulf %5, %31 : vector<8x128xf32>
    %33 = arith.addf %29, %32 : vector<8x128xf32>
    %c13 = arith.constant 13 : index
    %34 = memref.load %arg1[%c13] : memref<140xf32, #tpu.memory_space<smem>>
    %35 = vector.broadcast %34 : f32 to vector<8x128xf32>
    %36 = arith.addf %33, %35 : vector<8x128xf32>
    %cst_9 = arith.constant 0.00999999977 : f32
    %37 = vector.broadcast %cst_9 : f32 to vector<8x128xf32>
    %38 = arith.mulf %37, %36 : vector<8x128xf32>
    %39 = arith.maximumf %36, %38 : vector<8x128xf32>
    %c6 = arith.constant 6 : index
    %40 = memref.load %arg1[%c6] : memref<140xf32, #tpu.memory_space<smem>>
    %41 = vector.broadcast %40 : f32 to vector<8x128xf32>
    %42 = arith.mulf %1, %41 : vector<8x128xf32>
    %c7 = arith.constant 7 : index
    %43 = memref.load %arg1[%c7] : memref<140xf32, #tpu.memory_space<smem>>
    %44 = vector.broadcast %43 : f32 to vector<8x128xf32>
    %45 = arith.mulf %3, %44 : vector<8x128xf32>
    %46 = arith.addf %42, %45 : vector<8x128xf32>
    %c8 = arith.constant 8 : index
    %47 = memref.load %arg1[%c8] : memref<140xf32, #tpu.memory_space<smem>>
    %48 = vector.broadcast %47 : f32 to vector<8x128xf32>
    %49 = arith.mulf %5, %48 : vector<8x128xf32>
    %50 = arith.addf %46, %49 : vector<8x128xf32>
    %c14 = arith.constant 14 : index
    %51 = memref.load %arg1[%c14] : memref<140xf32, #tpu.memory_space<smem>>
    %52 = vector.broadcast %51 : f32 to vector<8x128xf32>
    %53 = arith.addf %50, %52 : vector<8x128xf32>
    %cst_10 = arith.constant 0.00999999977 : f32
    %54 = vector.broadcast %cst_10 : f32 to vector<8x128xf32>
    %55 = arith.mulf %54, %53 : vector<8x128xf32>
    %56 = arith.maximumf %53, %55 : vector<8x128xf32>
    %c9 = arith.constant 9 : index
    %57 = memref.load %arg1[%c9] : memref<140xf32, #tpu.memory_space<smem>>
    %58 = vector.broadcast %57 : f32 to vector<8x128xf32>
    %59 = arith.mulf %1, %58 : vector<8x128xf32>
    %c10 = arith.constant 10 : index
    %60 = memref.load %arg1[%c10] : memref<140xf32, #tpu.memory_space<smem>>
    %61 = vector.broadcast %60 : f32 to vector<8x128xf32>
    %62 = arith.mulf %3, %61 : vector<8x128xf32>
    %63 = arith.addf %59, %62 : vector<8x128xf32>
    %c11 = arith.constant 11 : index
    %64 = memref.load %arg1[%c11] : memref<140xf32, #tpu.memory_space<smem>>
    %65 = vector.broadcast %64 : f32 to vector<8x128xf32>
    %66 = arith.mulf %5, %65 : vector<8x128xf32>
    %67 = arith.addf %63, %66 : vector<8x128xf32>
    %c15 = arith.constant 15 : index
    %68 = memref.load %arg1[%c15] : memref<140xf32, #tpu.memory_space<smem>>
    %69 = vector.broadcast %68 : f32 to vector<8x128xf32>
    %70 = arith.addf %67, %69 : vector<8x128xf32>
    %cst_11 = arith.constant 0.00999999977 : f32
    %71 = vector.broadcast %cst_11 : f32 to vector<8x128xf32>
    %72 = arith.mulf %71, %70 : vector<8x128xf32>
    %73 = arith.maximumf %70, %72 : vector<8x128xf32>
    %c16 = arith.constant 16 : index
    %74 = memref.load %arg1[%c16] : memref<140xf32, #tpu.memory_space<smem>>
    %75 = vector.broadcast %74 : f32 to vector<8x128xf32>
    %76 = arith.mulf %22, %75 : vector<8x128xf32>
    %c17 = arith.constant 17 : index
    %77 = memref.load %arg1[%c17] : memref<140xf32, #tpu.memory_space<smem>>
    %78 = vector.broadcast %77 : f32 to vector<8x128xf32>
    %79 = arith.mulf %39, %78 : vector<8x128xf32>
    %80 = arith.addf %76, %79 : vector<8x128xf32>
    %c18 = arith.constant 18 : index
    %81 = memref.load %arg1[%c18] : memref<140xf32, #tpu.memory_space<smem>>
    %82 = vector.broadcast %81 : f32 to vector<8x128xf32>
    %83 = arith.mulf %56, %82 : vector<8x128xf32>
    %84 = arith.addf %80, %83 : vector<8x128xf32>
    %c19 = arith.constant 19 : index
    %85 = memref.load %arg1[%c19] : memref<140xf32, #tpu.memory_space<smem>>
    %86 = vector.broadcast %85 : f32 to vector<8x128xf32>
    %87 = arith.mulf %73, %86 : vector<8x128xf32>
    %88 = arith.addf %84, %87 : vector<8x128xf32>
    %c36 = arith.constant 36 : index
    %89 = memref.load %arg1[%c36] : memref<140xf32, #tpu.memory_space<smem>>
    %90 = vector.broadcast %89 : f32 to vector<8x128xf32>
    %91 = arith.addf %88, %90 : vector<8x128xf32>
    %cst_12 = arith.constant 0.00999999977 : f32
    %92 = vector.broadcast %cst_12 : f32 to vector<8x128xf32>
    %93 = arith.mulf %92, %91 : vector<8x128xf32>
    %94 = arith.maximumf %91, %93 : vector<8x128xf32>
    %c20 = arith.constant 20 : index
    %95 = memref.load %arg1[%c20] : memref<140xf32, #tpu.memory_space<smem>>
    %96 = vector.broadcast %95 : f32 to vector<8x128xf32>
    %97 = arith.mulf %22, %96 : vector<8x128xf32>
    %c21 = arith.constant 21 : index
    %98 = memref.load %arg1[%c21] : memref<140xf32, #tpu.memory_space<smem>>
    %99 = vector.broadcast %98 : f32 to vector<8x128xf32>
    %100 = arith.mulf %39, %99 : vector<8x128xf32>
    %101 = arith.addf %97, %100 : vector<8x128xf32>
    %c22 = arith.constant 22 : index
    %102 = memref.load %arg1[%c22] : memref<140xf32, #tpu.memory_space<smem>>
    %103 = vector.broadcast %102 : f32 to vector<8x128xf32>
    %104 = arith.mulf %56, %103 : vector<8x128xf32>
    %105 = arith.addf %101, %104 : vector<8x128xf32>
    %c23 = arith.constant 23 : index
    %106 = memref.load %arg1[%c23] : memref<140xf32, #tpu.memory_space<smem>>
    %107 = vector.broadcast %106 : f32 to vector<8x128xf32>
    %108 = arith.mulf %73, %107 : vector<8x128xf32>
    %109 = arith.addf %105, %108 : vector<8x128xf32>
    %c37 = arith.constant 37 : index
    %110 = memref.load %arg1[%c37] : memref<140xf32, #tpu.memory_space<smem>>
    %111 = vector.broadcast %110 : f32 to vector<8x128xf32>
    %112 = arith.addf %109, %111 : vector<8x128xf32>
    %cst_13 = arith.constant 0.00999999977 : f32
    %113 = vector.broadcast %cst_13 : f32 to vector<8x128xf32>
    %114 = arith.mulf %113, %112 : vector<8x128xf32>
    %115 = arith.maximumf %112, %114 : vector<8x128xf32>
    %c24 = arith.constant 24 : index
    %116 = memref.load %arg1[%c24] : memref<140xf32, #tpu.memory_space<smem>>
    %117 = vector.broadcast %116 : f32 to vector<8x128xf32>
    %118 = arith.mulf %22, %117 : vector<8x128xf32>
    %c25 = arith.constant 25 : index
    %119 = memref.load %arg1[%c25] : memref<140xf32, #tpu.memory_space<smem>>
    %120 = vector.broadcast %119 : f32 to vector<8x128xf32>
    %121 = arith.mulf %39, %120 : vector<8x128xf32>
    %122 = arith.addf %118, %121 : vector<8x128xf32>
    %c26 = arith.constant 26 : index
    %123 = memref.load %arg1[%c26] : memref<140xf32, #tpu.memory_space<smem>>
    %124 = vector.broadcast %123 : f32 to vector<8x128xf32>
    %125 = arith.mulf %56, %124 : vector<8x128xf32>
    %126 = arith.addf %122, %125 : vector<8x128xf32>
    %c27 = arith.constant 27 : index
    %127 = memref.load %arg1[%c27] : memref<140xf32, #tpu.memory_space<smem>>
    %128 = vector.broadcast %127 : f32 to vector<8x128xf32>
    %129 = arith.mulf %73, %128 : vector<8x128xf32>
    %130 = arith.addf %126, %129 : vector<8x128xf32>
    %c38 = arith.constant 38 : index
    %131 = memref.load %arg1[%c38] : memref<140xf32, #tpu.memory_space<smem>>
    %132 = vector.broadcast %131 : f32 to vector<8x128xf32>
    %133 = arith.addf %130, %132 : vector<8x128xf32>
    %cst_14 = arith.constant 0.00999999977 : f32
    %134 = vector.broadcast %cst_14 : f32 to vector<8x128xf32>
    %135 = arith.mulf %134, %133 : vector<8x128xf32>
    %136 = arith.maximumf %133, %135 : vector<8x128xf32>
    %c28 = arith.constant 28 : index
    %137 = memref.load %arg1[%c28] : memref<140xf32, #tpu.memory_space<smem>>
    %138 = vector.broadcast %137 : f32 to vector<8x128xf32>
    %139 = arith.mulf %22, %138 : vector<8x128xf32>
    %c29 = arith.constant 29 : index
    %140 = memref.load %arg1[%c29] : memref<140xf32, #tpu.memory_space<smem>>
    %141 = vector.broadcast %140 : f32 to vector<8x128xf32>
    %142 = arith.mulf %39, %141 : vector<8x128xf32>
    %143 = arith.addf %139, %142 : vector<8x128xf32>
    %c30 = arith.constant 30 : index
    %144 = memref.load %arg1[%c30] : memref<140xf32, #tpu.memory_space<smem>>
    %145 = vector.broadcast %144 : f32 to vector<8x128xf32>
    %146 = arith.mulf %56, %145 : vector<8x128xf32>
    %147 = arith.addf %143, %146 : vector<8x128xf32>
    %c31 = arith.constant 31 : index
    %148 = memref.load %arg1[%c31] : memref<140xf32, #tpu.memory_space<smem>>
    %149 = vector.broadcast %148 : f32 to vector<8x128xf32>
    %150 = arith.mulf %73, %149 : vector<8x128xf32>
    %151 = arith.addf %147, %150 : vector<8x128xf32>
    %c39 = arith.constant 39 : index
    %152 = memref.load %arg1[%c39] : memref<140xf32, #tpu.memory_space<smem>>
    %153 = vector.broadcast %152 : f32 to vector<8x128xf32>
    %154 = arith.addf %151, %153 : vector<8x128xf32>
    %cst_15 = arith.constant 0.00999999977 : f32
    %155 = vector.broadcast %cst_15 : f32 to vector<8x128xf32>
    %156 = arith.mulf %155, %154 : vector<8x128xf32>
    %157 = arith.maximumf %154, %156 : vector<8x128xf32>
    %c32 = arith.constant 32 : index
    %158 = memref.load %arg1[%c32] : memref<140xf32, #tpu.memory_space<smem>>
    %159 = vector.broadcast %158 : f32 to vector<8x128xf32>
    %160 = arith.mulf %22, %159 : vector<8x128xf32>
    %c33 = arith.constant 33 : index
    %161 = memref.load %arg1[%c33] : memref<140xf32, #tpu.memory_space<smem>>
    %162 = vector.broadcast %161 : f32 to vector<8x128xf32>
    %163 = arith.mulf %39, %162 : vector<8x128xf32>
    %164 = arith.addf %160, %163 : vector<8x128xf32>
    %c34 = arith.constant 34 : index
    %165 = memref.load %arg1[%c34] : memref<140xf32, #tpu.memory_space<smem>>
    %166 = vector.broadcast %165 : f32 to vector<8x128xf32>
    %167 = arith.mulf %56, %166 : vector<8x128xf32>
    %168 = arith.addf %164, %167 : vector<8x128xf32>
    %c35 = arith.constant 35 : index
    %169 = memref.load %arg1[%c35] : memref<140xf32, #tpu.memory_space<smem>>
    %170 = vector.broadcast %169 : f32 to vector<8x128xf32>
    %171 = arith.mulf %73, %170 : vector<8x128xf32>
    %172 = arith.addf %168, %171 : vector<8x128xf32>
    %c40 = arith.constant 40 : index
    %173 = memref.load %arg1[%c40] : memref<140xf32, #tpu.memory_space<smem>>
    %174 = vector.broadcast %173 : f32 to vector<8x128xf32>
    %175 = arith.addf %172, %174 : vector<8x128xf32>
    %cst_16 = arith.constant 0.00999999977 : f32
    %176 = vector.broadcast %cst_16 : f32 to vector<8x128xf32>
    %177 = arith.mulf %176, %175 : vector<8x128xf32>
    %178 = arith.maximumf %175, %177 : vector<8x128xf32>
    %c41 = arith.constant 41 : index
    %179 = memref.load %arg1[%c41] : memref<140xf32, #tpu.memory_space<smem>>
    %180 = vector.broadcast %179 : f32 to vector<8x128xf32>
    %181 = arith.mulf %94, %180 : vector<8x128xf32>
    %c42 = arith.constant 42 : index
    %182 = memref.load %arg1[%c42] : memref<140xf32, #tpu.memory_space<smem>>
    %183 = vector.broadcast %182 : f32 to vector<8x128xf32>
    %184 = arith.mulf %115, %183 : vector<8x128xf32>
    %185 = arith.addf %181, %184 : vector<8x128xf32>
    %c43 = arith.constant 43 : index
    %186 = memref.load %arg1[%c43] : memref<140xf32, #tpu.memory_space<smem>>
    %187 = vector.broadcast %186 : f32 to vector<8x128xf32>
    %188 = arith.mulf %136, %187 : vector<8x128xf32>
    %189 = arith.addf %185, %188 : vector<8x128xf32>
    %c44 = arith.constant 44 : index
    %190 = memref.load %arg1[%c44] : memref<140xf32, #tpu.memory_space<smem>>
    %191 = vector.broadcast %190 : f32 to vector<8x128xf32>
    %192 = arith.mulf %157, %191 : vector<8x128xf32>
    %193 = arith.addf %189, %192 : vector<8x128xf32>
    %c45 = arith.constant 45 : index
    %194 = memref.load %arg1[%c45] : memref<140xf32, #tpu.memory_space<smem>>
    %195 = vector.broadcast %194 : f32 to vector<8x128xf32>
    %196 = arith.mulf %178, %195 : vector<8x128xf32>
    %197 = arith.addf %193, %196 : vector<8x128xf32>
    %c66 = arith.constant 66 : index
    %198 = memref.load %arg1[%c66] : memref<140xf32, #tpu.memory_space<smem>>
    %199 = vector.broadcast %198 : f32 to vector<8x128xf32>
    %200 = arith.addf %197, %199 : vector<8x128xf32>
    %c46 = arith.constant 46 : index
    %201 = memref.load %arg1[%c46] : memref<140xf32, #tpu.memory_space<smem>>
    %202 = vector.broadcast %201 : f32 to vector<8x128xf32>
    %203 = arith.mulf %94, %202 : vector<8x128xf32>
    %c47 = arith.constant 47 : index
    %204 = memref.load %arg1[%c47] : memref<140xf32, #tpu.memory_space<smem>>
    %205 = vector.broadcast %204 : f32 to vector<8x128xf32>
    %206 = arith.mulf %115, %205 : vector<8x128xf32>
    %207 = arith.addf %203, %206 : vector<8x128xf32>
    %c48 = arith.constant 48 : index
    %208 = memref.load %arg1[%c48] : memref<140xf32, #tpu.memory_space<smem>>
    %209 = vector.broadcast %208 : f32 to vector<8x128xf32>
    %210 = arith.mulf %136, %209 : vector<8x128xf32>
    %211 = arith.addf %207, %210 : vector<8x128xf32>
    %c49 = arith.constant 49 : index
    %212 = memref.load %arg1[%c49] : memref<140xf32, #tpu.memory_space<smem>>
    %213 = vector.broadcast %212 : f32 to vector<8x128xf32>
    %214 = arith.mulf %157, %213 : vector<8x128xf32>
    %215 = arith.addf %211, %214 : vector<8x128xf32>
    %c50 = arith.constant 50 : index
    %216 = memref.load %arg1[%c50] : memref<140xf32, #tpu.memory_space<smem>>
    %217 = vector.broadcast %216 : f32 to vector<8x128xf32>
    %218 = arith.mulf %178, %217 : vector<8x128xf32>
    %219 = arith.addf %215, %218 : vector<8x128xf32>
    %c67 = arith.constant 67 : index
    %220 = memref.load %arg1[%c67] : memref<140xf32, #tpu.memory_space<smem>>
    %221 = vector.broadcast %220 : f32 to vector<8x128xf32>
    %222 = arith.addf %219, %221 : vector<8x128xf32>
    %c51 = arith.constant 51 : index
    %223 = memref.load %arg1[%c51] : memref<140xf32, #tpu.memory_space<smem>>
    %224 = vector.broadcast %223 : f32 to vector<8x128xf32>
    %225 = arith.mulf %94, %224 : vector<8x128xf32>
    %c52 = arith.constant 52 : index
    %226 = memref.load %arg1[%c52] : memref<140xf32, #tpu.memory_space<smem>>
    %227 = vector.broadcast %226 : f32 to vector<8x128xf32>
    %228 = arith.mulf %115, %227 : vector<8x128xf32>
    %229 = arith.addf %225, %228 : vector<8x128xf32>
    %c53 = arith.constant 53 : index
    %230 = memref.load %arg1[%c53] : memref<140xf32, #tpu.memory_space<smem>>
    %231 = vector.broadcast %230 : f32 to vector<8x128xf32>
    %232 = arith.mulf %136, %231 : vector<8x128xf32>
    %233 = arith.addf %229, %232 : vector<8x128xf32>
    %c54 = arith.constant 54 : index
    %234 = memref.load %arg1[%c54] : memref<140xf32, #tpu.memory_space<smem>>
    %235 = vector.broadcast %234 : f32 to vector<8x128xf32>
    %236 = arith.mulf %157, %235 : vector<8x128xf32>
    %237 = arith.addf %233, %236 : vector<8x128xf32>
    %c55 = arith.constant 55 : index
    %238 = memref.load %arg1[%c55] : memref<140xf32, #tpu.memory_space<smem>>
    %239 = vector.broadcast %238 : f32 to vector<8x128xf32>
    %240 = arith.mulf %178, %239 : vector<8x128xf32>
    %241 = arith.addf %237, %240 : vector<8x128xf32>
    %c68 = arith.constant 68 : index
    %242 = memref.load %arg1[%c68] : memref<140xf32, #tpu.memory_space<smem>>
    %243 = vector.broadcast %242 : f32 to vector<8x128xf32>
    %244 = arith.addf %241, %243 : vector<8x128xf32>
    %c56 = arith.constant 56 : index
    %245 = memref.load %arg1[%c56] : memref<140xf32, #tpu.memory_space<smem>>
    %246 = vector.broadcast %245 : f32 to vector<8x128xf32>
    %247 = arith.mulf %94, %246 : vector<8x128xf32>
    %c57 = arith.constant 57 : index
    %248 = memref.load %arg1[%c57] : memref<140xf32, #tpu.memory_space<smem>>
    %249 = vector.broadcast %248 : f32 to vector<8x128xf32>
    %250 = arith.mulf %115, %249 : vector<8x128xf32>
    %251 = arith.addf %247, %250 : vector<8x128xf32>
    %c58 = arith.constant 58 : index
    %252 = memref.load %arg1[%c58] : memref<140xf32, #tpu.memory_space<smem>>
    %253 = vector.broadcast %252 : f32 to vector<8x128xf32>
    %254 = arith.mulf %136, %253 : vector<8x128xf32>
    %255 = arith.addf %251, %254 : vector<8x128xf32>
    %c59 = arith.constant 59 : index
    %256 = memref.load %arg1[%c59] : memref<140xf32, #tpu.memory_space<smem>>
    %257 = vector.broadcast %256 : f32 to vector<8x128xf32>
    %258 = arith.mulf %157, %257 : vector<8x128xf32>
    %259 = arith.addf %255, %258 : vector<8x128xf32>
    %c60 = arith.constant 60 : index
    %260 = memref.load %arg1[%c60] : memref<140xf32, #tpu.memory_space<smem>>
    %261 = vector.broadcast %260 : f32 to vector<8x128xf32>
    %262 = arith.mulf %178, %261 : vector<8x128xf32>
    %263 = arith.addf %259, %262 : vector<8x128xf32>
    %c69 = arith.constant 69 : index
    %264 = memref.load %arg1[%c69] : memref<140xf32, #tpu.memory_space<smem>>
    %265 = vector.broadcast %264 : f32 to vector<8x128xf32>
    %266 = arith.addf %263, %265 : vector<8x128xf32>
    %c61 = arith.constant 61 : index
    %267 = memref.load %arg1[%c61] : memref<140xf32, #tpu.memory_space<smem>>
    %268 = vector.broadcast %267 : f32 to vector<8x128xf32>
    %269 = arith.mulf %94, %268 : vector<8x128xf32>
    %c62 = arith.constant 62 : index
    %270 = memref.load %arg1[%c62] : memref<140xf32, #tpu.memory_space<smem>>
    %271 = vector.broadcast %270 : f32 to vector<8x128xf32>
    %272 = arith.mulf %115, %271 : vector<8x128xf32>
    %273 = arith.addf %269, %272 : vector<8x128xf32>
    %c63 = arith.constant 63 : index
    %274 = memref.load %arg1[%c63] : memref<140xf32, #tpu.memory_space<smem>>
    %275 = vector.broadcast %274 : f32 to vector<8x128xf32>
    %276 = arith.mulf %136, %275 : vector<8x128xf32>
    %277 = arith.addf %273, %276 : vector<8x128xf32>
    %c64 = arith.constant 64 : index
    %278 = memref.load %arg1[%c64] : memref<140xf32, #tpu.memory_space<smem>>
    %279 = vector.broadcast %278 : f32 to vector<8x128xf32>
    %280 = arith.mulf %157, %279 : vector<8x128xf32>
    %281 = arith.addf %277, %280 : vector<8x128xf32>
    %c65 = arith.constant 65 : index
    %282 = memref.load %arg1[%c65] : memref<140xf32, #tpu.memory_space<smem>>
    %283 = vector.broadcast %282 : f32 to vector<8x128xf32>
    %284 = arith.mulf %178, %283 : vector<8x128xf32>
    %285 = arith.addf %281, %284 : vector<8x128xf32>
    %c70 = arith.constant 70 : index
    %286 = memref.load %arg1[%c70] : memref<140xf32, #tpu.memory_space<smem>>
    %287 = vector.broadcast %286 : f32 to vector<8x128xf32>
    %288 = arith.addf %285, %287 : vector<8x128xf32>
    %c71 = arith.constant 71 : index
    %289 = memref.load %arg1[%c71] : memref<140xf32, #tpu.memory_space<smem>>
    %290 = vector.broadcast %289 : f32 to vector<8x128xf32>
    %291 = arith.mulf %200, %290 : vector<8x128xf32>
    %c72 = arith.constant 72 : index
    %292 = memref.load %arg1[%c72] : memref<140xf32, #tpu.memory_space<smem>>
    %293 = vector.broadcast %292 : f32 to vector<8x128xf32>
    %294 = arith.mulf %222, %293 : vector<8x128xf32>
    %295 = arith.addf %291, %294 : vector<8x128xf32>
    %c73 = arith.constant 73 : index
    %296 = memref.load %arg1[%c73] : memref<140xf32, #tpu.memory_space<smem>>
    %297 = vector.broadcast %296 : f32 to vector<8x128xf32>
    %298 = arith.mulf %244, %297 : vector<8x128xf32>
    %299 = arith.addf %295, %298 : vector<8x128xf32>
    %c74 = arith.constant 74 : index
    %300 = memref.load %arg1[%c74] : memref<140xf32, #tpu.memory_space<smem>>
    %301 = vector.broadcast %300 : f32 to vector<8x128xf32>
    %302 = arith.mulf %266, %301 : vector<8x128xf32>
    %303 = arith.addf %299, %302 : vector<8x128xf32>
    %c75 = arith.constant 75 : index
    %304 = memref.load %arg1[%c75] : memref<140xf32, #tpu.memory_space<smem>>
    %305 = vector.broadcast %304 : f32 to vector<8x128xf32>
    %306 = arith.mulf %288, %305 : vector<8x128xf32>
    %307 = arith.addf %303, %306 : vector<8x128xf32>
    %c96 = arith.constant 96 : index
    %308 = memref.load %arg1[%c96] : memref<140xf32, #tpu.memory_space<smem>>
    %309 = vector.broadcast %308 : f32 to vector<8x128xf32>
    %310 = arith.addf %307, %309 : vector<8x128xf32>
    %cst_17 = arith.constant 0.00999999977 : f32
    %311 = vector.broadcast %cst_17 : f32 to vector<8x128xf32>
    %312 = arith.mulf %311, %310 : vector<8x128xf32>
    %313 = arith.maximumf %310, %312 : vector<8x128xf32>
    %c76 = arith.constant 76 : index
    %314 = memref.load %arg1[%c76] : memref<140xf32, #tpu.memory_space<smem>>
    %315 = vector.broadcast %314 : f32 to vector<8x128xf32>
    %316 = arith.mulf %200, %315 : vector<8x128xf32>
    %c77 = arith.constant 77 : index
    %317 = memref.load %arg1[%c77] : memref<140xf32, #tpu.memory_space<smem>>
    %318 = vector.broadcast %317 : f32 to vector<8x128xf32>
    %319 = arith.mulf %222, %318 : vector<8x128xf32>
    %320 = arith.addf %316, %319 : vector<8x128xf32>
    %c78 = arith.constant 78 : index
    %321 = memref.load %arg1[%c78] : memref<140xf32, #tpu.memory_space<smem>>
    %322 = vector.broadcast %321 : f32 to vector<8x128xf32>
    %323 = arith.mulf %244, %322 : vector<8x128xf32>
    %324 = arith.addf %320, %323 : vector<8x128xf32>
    %c79 = arith.constant 79 : index
    %325 = memref.load %arg1[%c79] : memref<140xf32, #tpu.memory_space<smem>>
    %326 = vector.broadcast %325 : f32 to vector<8x128xf32>
    %327 = arith.mulf %266, %326 : vector<8x128xf32>
    %328 = arith.addf %324, %327 : vector<8x128xf32>
    %c80 = arith.constant 80 : index
    %329 = memref.load %arg1[%c80] : memref<140xf32, #tpu.memory_space<smem>>
    %330 = vector.broadcast %329 : f32 to vector<8x128xf32>
    %331 = arith.mulf %288, %330 : vector<8x128xf32>
    %332 = arith.addf %328, %331 : vector<8x128xf32>
    %c97 = arith.constant 97 : index
    %333 = memref.load %arg1[%c97] : memref<140xf32, #tpu.memory_space<smem>>
    %334 = vector.broadcast %333 : f32 to vector<8x128xf32>
    %335 = arith.addf %332, %334 : vector<8x128xf32>
    %cst_18 = arith.constant 0.00999999977 : f32
    %336 = vector.broadcast %cst_18 : f32 to vector<8x128xf32>
    %337 = arith.mulf %336, %335 : vector<8x128xf32>
    %338 = arith.maximumf %335, %337 : vector<8x128xf32>
    %c81 = arith.constant 81 : index
    %339 = memref.load %arg1[%c81] : memref<140xf32, #tpu.memory_space<smem>>
    %340 = vector.broadcast %339 : f32 to vector<8x128xf32>
    %341 = arith.mulf %200, %340 : vector<8x128xf32>
    %c82 = arith.constant 82 : index
    %342 = memref.load %arg1[%c82] : memref<140xf32, #tpu.memory_space<smem>>
    %343 = vector.broadcast %342 : f32 to vector<8x128xf32>
    %344 = arith.mulf %222, %343 : vector<8x128xf32>
    %345 = arith.addf %341, %344 : vector<8x128xf32>
    %c83 = arith.constant 83 : index
    %346 = memref.load %arg1[%c83] : memref<140xf32, #tpu.memory_space<smem>>
    %347 = vector.broadcast %346 : f32 to vector<8x128xf32>
    %348 = arith.mulf %244, %347 : vector<8x128xf32>
    %349 = arith.addf %345, %348 : vector<8x128xf32>
    %c84 = arith.constant 84 : index
    %350 = memref.load %arg1[%c84] : memref<140xf32, #tpu.memory_space<smem>>
    %351 = vector.broadcast %350 : f32 to vector<8x128xf32>
    %352 = arith.mulf %266, %351 : vector<8x128xf32>
    %353 = arith.addf %349, %352 : vector<8x128xf32>
    %c85 = arith.constant 85 : index
    %354 = memref.load %arg1[%c85] : memref<140xf32, #tpu.memory_space<smem>>
    %355 = vector.broadcast %354 : f32 to vector<8x128xf32>
    %356 = arith.mulf %288, %355 : vector<8x128xf32>
    %357 = arith.addf %353, %356 : vector<8x128xf32>
    %c98 = arith.constant 98 : index
    %358 = memref.load %arg1[%c98] : memref<140xf32, #tpu.memory_space<smem>>
    %359 = vector.broadcast %358 : f32 to vector<8x128xf32>
    %360 = arith.addf %357, %359 : vector<8x128xf32>
    %cst_19 = arith.constant 0.00999999977 : f32
    %361 = vector.broadcast %cst_19 : f32 to vector<8x128xf32>
    %362 = arith.mulf %361, %360 : vector<8x128xf32>
    %363 = arith.maximumf %360, %362 : vector<8x128xf32>
    %c86 = arith.constant 86 : index
    %364 = memref.load %arg1[%c86] : memref<140xf32, #tpu.memory_space<smem>>
    %365 = vector.broadcast %364 : f32 to vector<8x128xf32>
    %366 = arith.mulf %200, %365 : vector<8x128xf32>
    %c87 = arith.constant 87 : index
    %367 = memref.load %arg1[%c87] : memref<140xf32, #tpu.memory_space<smem>>
    %368 = vector.broadcast %367 : f32 to vector<8x128xf32>
    %369 = arith.mulf %222, %368 : vector<8x128xf32>
    %370 = arith.addf %366, %369 : vector<8x128xf32>
    %c88 = arith.constant 88 : index
    %371 = memref.load %arg1[%c88] : memref<140xf32, #tpu.memory_space<smem>>
    %372 = vector.broadcast %371 : f32 to vector<8x128xf32>
    %373 = arith.mulf %244, %372 : vector<8x128xf32>
    %374 = arith.addf %370, %373 : vector<8x128xf32>
    %c89 = arith.constant 89 : index
    %375 = memref.load %arg1[%c89] : memref<140xf32, #tpu.memory_space<smem>>
    %376 = vector.broadcast %375 : f32 to vector<8x128xf32>
    %377 = arith.mulf %266, %376 : vector<8x128xf32>
    %378 = arith.addf %374, %377 : vector<8x128xf32>
    %c90 = arith.constant 90 : index
    %379 = memref.load %arg1[%c90] : memref<140xf32, #tpu.memory_space<smem>>
    %380 = vector.broadcast %379 : f32 to vector<8x128xf32>
    %381 = arith.mulf %288, %380 : vector<8x128xf32>
    %382 = arith.addf %378, %381 : vector<8x128xf32>
    %c99 = arith.constant 99 : index
    %383 = memref.load %arg1[%c99] : memref<140xf32, #tpu.memory_space<smem>>
    %384 = vector.broadcast %383 : f32 to vector<8x128xf32>
    %385 = arith.addf %382, %384 : vector<8x128xf32>
    %cst_20 = arith.constant 0.00999999977 : f32
    %386 = vector.broadcast %cst_20 : f32 to vector<8x128xf32>
    %387 = arith.mulf %386, %385 : vector<8x128xf32>
    %388 = arith.maximumf %385, %387 : vector<8x128xf32>
    %c91 = arith.constant 91 : index
    %389 = memref.load %arg1[%c91] : memref<140xf32, #tpu.memory_space<smem>>
    %390 = vector.broadcast %389 : f32 to vector<8x128xf32>
    %391 = arith.mulf %200, %390 : vector<8x128xf32>
    %c92 = arith.constant 92 : index
    %392 = memref.load %arg1[%c92] : memref<140xf32, #tpu.memory_space<smem>>
    %393 = vector.broadcast %392 : f32 to vector<8x128xf32>
    %394 = arith.mulf %222, %393 : vector<8x128xf32>
    %395 = arith.addf %391, %394 : vector<8x128xf32>
    %c93 = arith.constant 93 : index
    %396 = memref.load %arg1[%c93] : memref<140xf32, #tpu.memory_space<smem>>
    %397 = vector.broadcast %396 : f32 to vector<8x128xf32>
    %398 = arith.mulf %244, %397 : vector<8x128xf32>
    %399 = arith.addf %395, %398 : vector<8x128xf32>
    %c94 = arith.constant 94 : index
    %400 = memref.load %arg1[%c94] : memref<140xf32, #tpu.memory_space<smem>>
    %401 = vector.broadcast %400 : f32 to vector<8x128xf32>
    %402 = arith.mulf %266, %401 : vector<8x128xf32>
    %403 = arith.addf %399, %402 : vector<8x128xf32>
    %c95 = arith.constant 95 : index
    %404 = memref.load %arg1[%c95] : memref<140xf32, #tpu.memory_space<smem>>
    %405 = vector.broadcast %404 : f32 to vector<8x128xf32>
    %406 = arith.mulf %288, %405 : vector<8x128xf32>
    %407 = arith.addf %403, %406 : vector<8x128xf32>
    %c100 = arith.constant 100 : index
    %408 = memref.load %arg1[%c100] : memref<140xf32, #tpu.memory_space<smem>>
    %409 = vector.broadcast %408 : f32 to vector<8x128xf32>
    %410 = arith.addf %407, %409 : vector<8x128xf32>
    %cst_21 = arith.constant 0.00999999977 : f32
    %411 = vector.broadcast %cst_21 : f32 to vector<8x128xf32>
    %412 = arith.mulf %411, %410 : vector<8x128xf32>
    %413 = arith.maximumf %410, %412 : vector<8x128xf32>
    %c101 = arith.constant 101 : index
    %414 = memref.load %arg1[%c101] : memref<140xf32, #tpu.memory_space<smem>>
    %415 = vector.broadcast %414 : f32 to vector<8x128xf32>
    %416 = arith.mulf %313, %415 : vector<8x128xf32>
    %c102 = arith.constant 102 : index
    %417 = memref.load %arg1[%c102] : memref<140xf32, #tpu.memory_space<smem>>
    %418 = vector.broadcast %417 : f32 to vector<8x128xf32>
    %419 = arith.mulf %338, %418 : vector<8x128xf32>
    %420 = arith.addf %416, %419 : vector<8x128xf32>
    %c103 = arith.constant 103 : index
    %421 = memref.load %arg1[%c103] : memref<140xf32, #tpu.memory_space<smem>>
    %422 = vector.broadcast %421 : f32 to vector<8x128xf32>
    %423 = arith.mulf %363, %422 : vector<8x128xf32>
    %424 = arith.addf %420, %423 : vector<8x128xf32>
    %c104 = arith.constant 104 : index
    %425 = memref.load %arg1[%c104] : memref<140xf32, #tpu.memory_space<smem>>
    %426 = vector.broadcast %425 : f32 to vector<8x128xf32>
    %427 = arith.mulf %388, %426 : vector<8x128xf32>
    %428 = arith.addf %424, %427 : vector<8x128xf32>
    %c105 = arith.constant 105 : index
    %429 = memref.load %arg1[%c105] : memref<140xf32, #tpu.memory_space<smem>>
    %430 = vector.broadcast %429 : f32 to vector<8x128xf32>
    %431 = arith.mulf %413, %430 : vector<8x128xf32>
    %432 = arith.addf %428, %431 : vector<8x128xf32>
    %c121 = arith.constant 121 : index
    %433 = memref.load %arg1[%c121] : memref<140xf32, #tpu.memory_space<smem>>
    %434 = vector.broadcast %433 : f32 to vector<8x128xf32>
    %435 = arith.addf %432, %434 : vector<8x128xf32>
    %cst_22 = arith.constant 0.00999999977 : f32
    %436 = vector.broadcast %cst_22 : f32 to vector<8x128xf32>
    %437 = arith.mulf %436, %435 : vector<8x128xf32>
    %438 = arith.maximumf %435, %437 : vector<8x128xf32>
    %c106 = arith.constant 106 : index
    %439 = memref.load %arg1[%c106] : memref<140xf32, #tpu.memory_space<smem>>
    %440 = vector.broadcast %439 : f32 to vector<8x128xf32>
    %441 = arith.mulf %313, %440 : vector<8x128xf32>
    %c107 = arith.constant 107 : index
    %442 = memref.load %arg1[%c107] : memref<140xf32, #tpu.memory_space<smem>>
    %443 = vector.broadcast %442 : f32 to vector<8x128xf32>
    %444 = arith.mulf %338, %443 : vector<8x128xf32>
    %445 = arith.addf %441, %444 : vector<8x128xf32>
    %c108 = arith.constant 108 : index
    %446 = memref.load %arg1[%c108] : memref<140xf32, #tpu.memory_space<smem>>
    %447 = vector.broadcast %446 : f32 to vector<8x128xf32>
    %448 = arith.mulf %363, %447 : vector<8x128xf32>
    %449 = arith.addf %445, %448 : vector<8x128xf32>
    %c109 = arith.constant 109 : index
    %450 = memref.load %arg1[%c109] : memref<140xf32, #tpu.memory_space<smem>>
    %451 = vector.broadcast %450 : f32 to vector<8x128xf32>
    %452 = arith.mulf %388, %451 : vector<8x128xf32>
    %453 = arith.addf %449, %452 : vector<8x128xf32>
    %c110 = arith.constant 110 : index
    %454 = memref.load %arg1[%c110] : memref<140xf32, #tpu.memory_space<smem>>
    %455 = vector.broadcast %454 : f32 to vector<8x128xf32>
    %456 = arith.mulf %413, %455 : vector<8x128xf32>
    %457 = arith.addf %453, %456 : vector<8x128xf32>
    %c122 = arith.constant 122 : index
    %458 = memref.load %arg1[%c122] : memref<140xf32, #tpu.memory_space<smem>>
    %459 = vector.broadcast %458 : f32 to vector<8x128xf32>
    %460 = arith.addf %457, %459 : vector<8x128xf32>
    %cst_23 = arith.constant 0.00999999977 : f32
    %461 = vector.broadcast %cst_23 : f32 to vector<8x128xf32>
    %462 = arith.mulf %461, %460 : vector<8x128xf32>
    %463 = arith.maximumf %460, %462 : vector<8x128xf32>
    %c111 = arith.constant 111 : index
    %464 = memref.load %arg1[%c111] : memref<140xf32, #tpu.memory_space<smem>>
    %465 = vector.broadcast %464 : f32 to vector<8x128xf32>
    %466 = arith.mulf %313, %465 : vector<8x128xf32>
    %c112 = arith.constant 112 : index
    %467 = memref.load %arg1[%c112] : memref<140xf32, #tpu.memory_space<smem>>
    %468 = vector.broadcast %467 : f32 to vector<8x128xf32>
    %469 = arith.mulf %338, %468 : vector<8x128xf32>
    %470 = arith.addf %466, %469 : vector<8x128xf32>
    %c113 = arith.constant 113 : index
    %471 = memref.load %arg1[%c113] : memref<140xf32, #tpu.memory_space<smem>>
    %472 = vector.broadcast %471 : f32 to vector<8x128xf32>
    %473 = arith.mulf %363, %472 : vector<8x128xf32>
    %474 = arith.addf %470, %473 : vector<8x128xf32>
    %c114 = arith.constant 114 : index
    %475 = memref.load %arg1[%c114] : memref<140xf32, #tpu.memory_space<smem>>
    %476 = vector.broadcast %475 : f32 to vector<8x128xf32>
    %477 = arith.mulf %388, %476 : vector<8x128xf32>
    %478 = arith.addf %474, %477 : vector<8x128xf32>
    %c115 = arith.constant 115 : index
    %479 = memref.load %arg1[%c115] : memref<140xf32, #tpu.memory_space<smem>>
    %480 = vector.broadcast %479 : f32 to vector<8x128xf32>
    %481 = arith.mulf %413, %480 : vector<8x128xf32>
    %482 = arith.addf %478, %481 : vector<8x128xf32>
    %c123 = arith.constant 123 : index
    %483 = memref.load %arg1[%c123] : memref<140xf32, #tpu.memory_space<smem>>
    %484 = vector.broadcast %483 : f32 to vector<8x128xf32>
    %485 = arith.addf %482, %484 : vector<8x128xf32>
    %cst_24 = arith.constant 0.00999999977 : f32
    %486 = vector.broadcast %cst_24 : f32 to vector<8x128xf32>
    %487 = arith.mulf %486, %485 : vector<8x128xf32>
    %488 = arith.maximumf %485, %487 : vector<8x128xf32>
    %c116 = arith.constant 116 : index
    %489 = memref.load %arg1[%c116] : memref<140xf32, #tpu.memory_space<smem>>
    %490 = vector.broadcast %489 : f32 to vector<8x128xf32>
    %491 = arith.mulf %313, %490 : vector<8x128xf32>
    %c117 = arith.constant 117 : index
    %492 = memref.load %arg1[%c117] : memref<140xf32, #tpu.memory_space<smem>>
    %493 = vector.broadcast %492 : f32 to vector<8x128xf32>
    %494 = arith.mulf %338, %493 : vector<8x128xf32>
    %495 = arith.addf %491, %494 : vector<8x128xf32>
    %c118 = arith.constant 118 : index
    %496 = memref.load %arg1[%c118] : memref<140xf32, #tpu.memory_space<smem>>
    %497 = vector.broadcast %496 : f32 to vector<8x128xf32>
    %498 = arith.mulf %363, %497 : vector<8x128xf32>
    %499 = arith.addf %495, %498 : vector<8x128xf32>
    %c119 = arith.constant 119 : index
    %500 = memref.load %arg1[%c119] : memref<140xf32, #tpu.memory_space<smem>>
    %501 = vector.broadcast %500 : f32 to vector<8x128xf32>
    %502 = arith.mulf %388, %501 : vector<8x128xf32>
    %503 = arith.addf %499, %502 : vector<8x128xf32>
    %c120 = arith.constant 120 : index
    %504 = memref.load %arg1[%c120] : memref<140xf32, #tpu.memory_space<smem>>
    %505 = vector.broadcast %504 : f32 to vector<8x128xf32>
    %506 = arith.mulf %413, %505 : vector<8x128xf32>
    %507 = arith.addf %503, %506 : vector<8x128xf32>
    %c124 = arith.constant 124 : index
    %508 = memref.load %arg1[%c124] : memref<140xf32, #tpu.memory_space<smem>>
    %509 = vector.broadcast %508 : f32 to vector<8x128xf32>
    %510 = arith.addf %507, %509 : vector<8x128xf32>
    %cst_25 = arith.constant 0.00999999977 : f32
    %511 = vector.broadcast %cst_25 : f32 to vector<8x128xf32>
    %512 = arith.mulf %511, %510 : vector<8x128xf32>
    %513 = arith.maximumf %510, %512 : vector<8x128xf32>
    %c125 = arith.constant 125 : index
    %514 = memref.load %arg1[%c125] : memref<140xf32, #tpu.memory_space<smem>>
    %515 = vector.broadcast %514 : f32 to vector<8x128xf32>
    %516 = arith.mulf %438, %515 : vector<8x128xf32>
    %c126 = arith.constant 126 : index
    %517 = memref.load %arg1[%c126] : memref<140xf32, #tpu.memory_space<smem>>
    %518 = vector.broadcast %517 : f32 to vector<8x128xf32>
    %519 = arith.mulf %463, %518 : vector<8x128xf32>
    %520 = arith.addf %516, %519 : vector<8x128xf32>
    %c127 = arith.constant 127 : index
    %521 = memref.load %arg1[%c127] : memref<140xf32, #tpu.memory_space<smem>>
    %522 = vector.broadcast %521 : f32 to vector<8x128xf32>
    %523 = arith.mulf %488, %522 : vector<8x128xf32>
    %524 = arith.addf %520, %523 : vector<8x128xf32>
    %c128 = arith.constant 128 : index
    %525 = memref.load %arg1[%c128] : memref<140xf32, #tpu.memory_space<smem>>
    %526 = vector.broadcast %525 : f32 to vector<8x128xf32>
    %527 = arith.mulf %513, %526 : vector<8x128xf32>
    %528 = arith.addf %524, %527 : vector<8x128xf32>
    %c137 = arith.constant 137 : index
    %529 = memref.load %arg1[%c137] : memref<140xf32, #tpu.memory_space<smem>>
    %530 = vector.broadcast %529 : f32 to vector<8x128xf32>
    %531 = arith.addf %528, %530 : vector<8x128xf32>
    %c129 = arith.constant 129 : index
    %532 = memref.load %arg1[%c129] : memref<140xf32, #tpu.memory_space<smem>>
    %533 = vector.broadcast %532 : f32 to vector<8x128xf32>
    %534 = arith.mulf %438, %533 : vector<8x128xf32>
    %c130 = arith.constant 130 : index
    %535 = memref.load %arg1[%c130] : memref<140xf32, #tpu.memory_space<smem>>
    %536 = vector.broadcast %535 : f32 to vector<8x128xf32>
    %537 = arith.mulf %463, %536 : vector<8x128xf32>
    %538 = arith.addf %534, %537 : vector<8x128xf32>
    %c131 = arith.constant 131 : index
    %539 = memref.load %arg1[%c131] : memref<140xf32, #tpu.memory_space<smem>>
    %540 = vector.broadcast %539 : f32 to vector<8x128xf32>
    %541 = arith.mulf %488, %540 : vector<8x128xf32>
    %542 = arith.addf %538, %541 : vector<8x128xf32>
    %c132 = arith.constant 132 : index
    %543 = memref.load %arg1[%c132] : memref<140xf32, #tpu.memory_space<smem>>
    %544 = vector.broadcast %543 : f32 to vector<8x128xf32>
    %545 = arith.mulf %513, %544 : vector<8x128xf32>
    %546 = arith.addf %542, %545 : vector<8x128xf32>
    %c138 = arith.constant 138 : index
    %547 = memref.load %arg1[%c138] : memref<140xf32, #tpu.memory_space<smem>>
    %548 = vector.broadcast %547 : f32 to vector<8x128xf32>
    %549 = arith.addf %546, %548 : vector<8x128xf32>
    %c133 = arith.constant 133 : index
    %550 = memref.load %arg1[%c133] : memref<140xf32, #tpu.memory_space<smem>>
    %551 = vector.broadcast %550 : f32 to vector<8x128xf32>
    %552 = arith.mulf %438, %551 : vector<8x128xf32>
    %c134 = arith.constant 134 : index
    %553 = memref.load %arg1[%c134] : memref<140xf32, #tpu.memory_space<smem>>
    %554 = vector.broadcast %553 : f32 to vector<8x128xf32>
    %555 = arith.mulf %463, %554 : vector<8x128xf32>
    %556 = arith.addf %552, %555 : vector<8x128xf32>
    %c135 = arith.constant 135 : index
    %557 = memref.load %arg1[%c135] : memref<140xf32, #tpu.memory_space<smem>>
    %558 = vector.broadcast %557 : f32 to vector<8x128xf32>
    %559 = arith.mulf %488, %558 : vector<8x128xf32>
    %560 = arith.addf %556, %559 : vector<8x128xf32>
    %c136 = arith.constant 136 : index
    %561 = memref.load %arg1[%c136] : memref<140xf32, #tpu.memory_space<smem>>
    %562 = vector.broadcast %561 : f32 to vector<8x128xf32>
    %563 = arith.mulf %513, %562 : vector<8x128xf32>
    %564 = arith.addf %560, %563 : vector<8x128xf32>
    %c139 = arith.constant 139 : index
    %565 = memref.load %arg1[%c139] : memref<140xf32, #tpu.memory_space<smem>>
    %566 = vector.broadcast %565 : f32 to vector<8x128xf32>
    %567 = arith.addf %564, %566 : vector<8x128xf32>
    %c0_26 = arith.constant 0 : index
    %c0_27 = arith.constant 0 : index
    %c0_28 = arith.constant 0 : index
    %568 = vector.load %arg4[%c0_26, %c0_27, %c0_28] : memref<5x8x128xf32, #tpu.memory_space<vmem>>, vector<1x8x128xf32>
    %569 = vector.shape_cast %568 : vector<1x8x128xf32> to vector<8x128xf32>
    %570 = vector.shape_cast %200 : vector<8x128xf32> to vector<1x8x128xf32>
    tpu.vector_store %arg4[%c0_26, %c0_27, %c0_28], %570 {strides = array<i32>} : memref<5x8x128xf32, #tpu.memory_space<vmem>>, vector<1x8x128xf32>,
    %c1_29 = arith.constant 1 : index
    %c0_30 = arith.constant 0 : index
    %c0_31 = arith.constant 0 : index
    %571 = vector.load %arg4[%c1_29, %c0_30, %c0_31] : memref<5x8x128xf32, #tpu.memory_space<vmem>>, vector<1x8x128xf32>
    %572 = vector.shape_cast %571 : vector<1x8x128xf32> to vector<8x128xf32>
    %573 = vector.shape_cast %222 : vector<8x128xf32> to vector<1x8x128xf32>
    tpu.vector_store %arg4[%c1_29, %c0_30, %c0_31], %573 {strides = array<i32>} : memref<5x8x128xf32, #tpu.memory_space<vmem>>, vector<1x8x128xf32>,
    %c2_32 = arith.constant 2 : index
    %c0_33 = arith.constant 0 : index
    %c0_34 = arith.constant 0 : index
    %574 = vector.load %arg4[%c2_32, %c0_33, %c0_34] : memref<5x8x128xf32, #tpu.memory_space<vmem>>, vector<1x8x128xf32>
    %575 = vector.shape_cast %574 : vector<1x8x128xf32> to vector<8x128xf32>
    %576 = vector.shape_cast %244 : vector<8x128xf32> to vector<1x8x128xf32>
    tpu.vector_store %arg4[%c2_32, %c0_33, %c0_34], %576 {strides = array<i32>} : memref<5x8x128xf32, #tpu.memory_space<vmem>>, vector<1x8x128xf32>,
    %c3_35 = arith.constant 3 : index
    %c0_36 = arith.constant 0 : index
    %c0_37 = arith.constant 0 : index
    %577 = vector.load %arg4[%c3_35, %c0_36, %c0_37] : memref<5x8x128xf32, #tpu.memory_space<vmem>>, vector<1x8x128xf32>
    %578 = vector.shape_cast %577 : vector<1x8x128xf32> to vector<8x128xf32>
    %579 = vector.shape_cast %266 : vector<8x128xf32> to vector<1x8x128xf32>
    tpu.vector_store %arg4[%c3_35, %c0_36, %c0_37], %579 {strides = array<i32>} : memref<5x8x128xf32, #tpu.memory_space<vmem>>, vector<1x8x128xf32>,
    %c4_38 = arith.constant 4 : index
    %c0_39 = arith.constant 0 : index
    %c0_40 = arith.constant 0 : index
    %580 = vector.load %arg4[%c4_38, %c0_39, %c0_40] : memref<5x8x128xf32, #tpu.memory_space<vmem>>, vector<1x8x128xf32>
    %581 = vector.shape_cast %580 : vector<1x8x128xf32> to vector<8x128xf32>
    %582 = vector.shape_cast %288 : vector<8x128xf32> to vector<1x8x128xf32>
    tpu.vector_store %arg4[%c4_38, %c0_39, %c0_40], %582 {strides = array<i32>} : memref<5x8x128xf32, #tpu.memory_space<vmem>>, vector<1x8x128xf32>,
    %c0_41 = arith.constant 0 : index
    %c0_42 = arith.constant 0 : index
    %c0_43 = arith.constant 0 : index
    %583 = vector.load %arg3[%c0_41, %c0_42, %c0_43] : memref<3x8x128xf32, #tpu.memory_space<vmem>>, vector<1x8x128xf32>
    %584 = vector.shape_cast %583 : vector<1x8x128xf32> to vector<8x128xf32>
    %585 = vector.shape_cast %531 : vector<8x128xf32> to vector<1x8x128xf32>
    tpu.vector_store %arg3[%c0_41, %c0_42, %c0_43], %585 {strides = array<i32>} : memref<3x8x128xf32, #tpu.memory_space<vmem>>, vector<1x8x128xf32>,
    %c1_44 = arith.constant 1 : index
    %c0_45 = arith.constant 0 : index
    %c0_46 = arith.constant 0 : index
    %586 = vector.load %arg3[%c1_44, %c0_45, %c0_46] : memref<3x8x128xf32, #tpu.memory_space<vmem>>, vector<1x8x128xf32>
    %587 = vector.shape_cast %586 : vector<1x8x128xf32> to vector<8x128xf32>
    %588 = vector.shape_cast %549 : vector<8x128xf32> to vector<1x8x128xf32>
    tpu.vector_store %arg3[%c1_44, %c0_45, %c0_46], %588 {strides = array<i32>} : memref<3x8x128xf32, #tpu.memory_space<vmem>>, vector<1x8x128xf32>,
    %c2_47 = arith.constant 2 : index
    %c0_48 = arith.constant 0 : index
    %c0_49 = arith.constant 0 : index
    %589 = vector.load %arg3[%c2_47, %c0_48, %c0_49] : memref<3x8x128xf32, #tpu.memory_space<vmem>>, vector<1x8x128xf32>
    %590 = vector.shape_cast %589 : vector<1x8x128xf32> to vector<8x128xf32>
    %591 = vector.shape_cast %567 : vector<8x128xf32> to vector<1x8x128xf32>
    tpu.vector_store %arg3[%c2_47, %c0_48, %c0_49], %591 {strides = array<i32>} : memref<3x8x128xf32, #tpu.memory_space<vmem>>, vector<1x8x128xf32>,
    return
  }
  func.func @transform_0(%arg0: i32) -> i32 {
    %c0_i32 = arith.constant 0 : i32
    %c0_i32_0 = arith.constant 0 : i32
    return %c0_i32 : i32
  }
  func.func @transform_1(%arg0: i32) -> (i32, i32, i32) {
    %c0_i32 = arith.constant 0 : i32
    %c0_i32_0 = arith.constant 0 : i32
    %c0_i32_1 = arith.constant 0 : i32
    return %c0_i32, %c0_i32_0, %arg0 : i32, i32, i32
  }
  func.func @transform_2(%arg0: i32) -> (i32, i32, i32) {
    %c0_i32 = arith.constant 0 : i32
    %c0_i32_0 = arith.constant 0 : i32
    %c0_i32_1 = arith.constant 0 : i32
    return %c0_i32, %c0_i32_0, %arg0 : i32, i32, i32
  }
  func.func @transform_3(%arg0: i32) -> (i32, i32, i32) {
    %c0_i32 = arith.constant 0 : i32
    %c0_i32_0 = arith.constant 0 : i32
    %c0_i32_1 = arith.constant 0 : i32
    return %c0_i32, %c0_i32_0, %arg0 : i32, i32, i32
  }
}

</mosaic_0001>

<llo_original>
// kernel: tpu_custom_call.1
$region0: #{tpu_custom_call.1}
  #allocation0 [shape = 'u32[]', space=smem, size = 0x4, offset = 0x4, fixed_abs, tag = 'smem constant byte address 0x4 - core index']
  #allocation1 [shape = 'u32[144,128]{1,0:T(1,128)}', space=vmem, size = 0x12000, scoped, tag = 'internal scratch']
  %s0 = inlined_call_operand.hbm [shape: f32[140], index: 0, kind: input, shape index: {}]
  %s1 = inlined_call_operand.hbm [shape: f32[3,8,256], index: 1, kind: input, shape index: {}]
  %s2 = inlined_call_operand.hbm [shape: f32[3,8,256], index: 2, kind: output, shape index: {0}]
  %s3 = inlined_call_operand.hbm [shape: f32[5,8,256], index: 3, kind: output, shape index: {1}]
  %4 = xla_tuple %s2, %s3
  %s5 = sld [smem:[#allocation0]]
  $region57: #{tpu_custom_call.1} parent=0
    _
  %s7 = ssub.s32 1, %s5
  %s8 = scalar_select 0, %s7, %s5
  $region1: #{tpu_custom_call.1} parent=0
    #allocation2 [shape = 'u8[1024]{0}', space=smem, size = 0x400, scoped, tag = 'input window, operand 0, single buffered']
    #allocation3 [shape = 's32[2]{0}', space=sflag, size = 0x8, scoped, tag = 'scoped memory for tpu_custom_call.1']
    #allocation4 [shape = 's32[2]{0}', space=sflag, size = 0x8, scoped, tag = 'scoped memory for tpu_custom_call.1']
    #allocation5 [shape = 's32[2]{0}', space=sflag, size = 0x8, scoped, tag = 'scoped memory for tpu_custom_call.1']
    #allocation6 [shape = 'u8[24576]{0}', space=vmem, size = 0x6000, scoped, tag = 'input window, operand 1']
    #allocation7 [shape = 'u8[24576]{0}', space=vmem, size = 0x6000, scoped, tag = 'output window, operand 0']
    #allocation8 [shape = 'u8[40960]{0}', space=vmem, size = 0xa000, scoped, tag = 'output window, operand 1']
    #allocation9 [shape = 's32[2]{0}', space=sflag, size = 0x8, scoped, tag = 'scoped memory for tpu_custom_call.1']
    %9 = vsyncpa [#allocation5], 0
    %10 = vsyncpa [#allocation3], 0
    %s11 = scalar_lea.sflag [#allocation3], 1
    %12 = vsyncpa %s11, 0
    %13 = vsyncpa [#allocation4], 0
    %s14 = scalar_lea.sflag [#allocation4], 1
    %15 = vsyncpa %s14, 0
    %16 = vsyncpa [#allocation9], 0
    %s17 = scalar_lea.sflag [#allocation9], 1
    %18 = vsyncpa %s17, 0
    loop: start=0, step=1, limit=4
    $region2: #{tpu_custom_call.1} parent=1 // loop_pre_header
      _
    $region3: #{tpu_custom_call.1} parent=1 // loop_header
      %s20 = sphi 0, %s24
      %p21 = scmp.ge.s32.totalorder %s20, 4
      %s28 = sphi 0, %s28
      %s30 = sphi 0, %s28
      %s31 = sphi 0, %s30
      %s45 = sphi 0, %s31
      %s51 = sphi 0, %s53
      %s54 = sphi 0, %s51
      %s55 = sphi 0, %s54
      %s71 = sphi 0, %s55
      %s77 = sphi 0, %s79
      %s80 = sphi 0, %s77
      %s81 = sphi 0, %s80
      %s97 = sphi 0, %s81
      %s103 = sphi 0, %s105
      %s106 = sphi 0, %s103
      %s107 = sphi 0, %s106
      %s123 = sphi 0, %s107
    $region4: #{tpu_custom_call.1} parent=1 // loop_header_branch
      %23 = sbr.rel (%p21) target = $region8
    $region5: #{tpu_custom_call.1} parent=1 // loop_body
      %s25 = ssub.s32 %s20, 1
      %s26 = ssub.s32 %s20, 2
      %s27 = sadd.s32 %s20, 1
      %s29 = sadd.s32 %s28, 1
      %p32 = scmp.eq.s32.totalorder %s20, 1
      %p33 = scmp.ne.s32.totalorder %s28, %s30
      %p34 = scmp.eq.s32.totalorder %s20, 0
      %p35 = por %p33, %p34
      %p36 = scmp.ne.s32.totalorder %s28, %s30
      %p37 = scmp.eq.s32.totalorder %s25, 1
      %p38 = por %p36, %p37
      %p39 = scmp.ne.s32.totalorder %s30, %s31
      %p40 = scmp.eq.s32.totalorder %s25, 0
      %p41 = por %p39, %p40
      %p42 = scmp.ne.s32.totalorder %s30, %s31
      %p43 = scmp.eq.s32.totalorder %s26, 1
      %p44 = por %p42, %p43
      %p46 = scmp.ne.s32.totalorder %s31, %s45
      %p47 = scmp.eq.s32.totalorder %s26, 0
      %p48 = por %p46, %p47
      %s49 = ssub.s32 %s20, %s27
      %p50 = scmp.eq.s32.totalorder %s49, 0
      %s52 = sadd.s32 %s51, 1
      %s53 = scalar_select %p50, %s51, %s52
      %p56 = pneg %p50
      %p57 = scmp.eq.s32.totalorder %s20, 1
      %p58 = por %p56, %p57
      %p59 = scmp.ne.s32.totalorder %s51, %s54
      %p60 = scmp.eq.s32.totalorder %s20, 0
      %p61 = por %p59, %p60
      %p62 = scmp.ne.s32.totalorder %s51, %s54
      %p63 = scmp.eq.s32.totalorder %s25, 1
      %p64 = por %p62, %p63
      %p65 = scmp.ne.s32.totalorder %s54, %s55
      %p66 = scmp.eq.s32.totalorder %s25, 0
      %p67 = por %p65, %p66
      %p68 = scmp.ne.s32.totalorder %s54, %s55
      %p69 = scmp.eq.s32.totalorder %s26, 1
      %p70 = por %p68, %p69
      %p72 = scmp.ne.s32.totalorder %s55, %s71
      %p73 = scmp.eq.s32.totalorder %s26, 0
      %p74 = por %p72, %p73
      %s75 = ssub.s32 %s20, %s27
      %p76 = scmp.eq.s32.totalorder %s75, 0
      %s78 = sadd.s32 %s77, 1
      %s79 = scalar_select %p76, %s77, %s78
      %p82 = pneg %p76
      %p83 = scmp.eq.s32.totalorder %s20, 1
      %p84 = por %p82, %p83
      %p85 = scmp.ne.s32.totalorder %s77, %s80
      %p86 = scmp.eq.s32.totalorder %s20, 0
      %p87 = por %p85, %p86
      %p88 = scmp.ne.s32.totalorder %s77, %s80
      %p89 = scmp.eq.s32.totalorder %s25, 1
      %p90 = por %p88, %p89
      %p91 = scmp.ne.s32.totalorder %s80, %s81
      %p92 = scmp.eq.s32.totalorder %s25, 0
      %p93 = por %p91, %p92
      %p94 = scmp.ne.s32.totalorder %s80, %s81
      %p95 = scmp.eq.s32.totalorder %s26, 1
      %p96 = por %p94, %p95
      %p98 = scmp.ne.s32.totalorder %s81, %s97
      %p99 = scmp.eq.s32.totalorder %s26, 0
      %p100 = por %p98, %p99
      %s101 = ssub.s32 %s20, %s27
      %p102 = scmp.eq.s32.totalorder %s101, 0
      %s104 = sadd.s32 %s103, 1
      %s105 = scalar_select %p102, %s103, %s104
      %p108 = pneg %p102
      %p109 = scmp.eq.s32.totalorder %s20, 1
      %p110 = por %p108, %p109
      %p111 = scmp.ne.s32.totalorder %s103, %s106
      %p112 = scmp.eq.s32.totalorder %s20, 0
      %p113 = por %p111, %p112
      %p114 = scmp.ne.s32.totalorder %s103, %s106
      %p115 = scmp.eq.s32.totalorder %s25, 1
      %p116 = por %p114, %p115
      %p117 = scmp.ne.s32.totalorder %s106, %s107
      %p118 = scmp.eq.s32.totalorder %s25, 0
      %p119 = por %p117, %p118
      %p120 = scmp.ne.s32.totalorder %s106, %s107
      %p121 = scmp.eq.s32.totalorder %s26, 1
      %p122 = por %p120, %p121
      %p124 = scmp.ne.s32.totalorder %s107, %s123
      %p125 = scmp.eq.s32.totalorder %s26, 0
      %p126 = por %p124, %p125
      %p127 = scmp.le.s32.totalorder 1, %s20
      %p128 = scmp.lt.s32.totalorder %s20, 3
      %p129 = pnand %p127, %p128
      %p130 = pneg %p129
      // Predicated region
      $region9: #{tpu_custom_call.1} parent=5 // pred_check
        _
      $region10: #{tpu_custom_call.1} parent=5 // pred_check_branch
        %132 = sbr.rel (%p129) target = $region12
      $region11: #{tpu_custom_call.1} parent=5 // pred_region
        %s133 = ssub.s32 %s20, 1
        // Predicated region
        $region13: #{tpu_custom_call.1} parent=11 // pred_check
          %p134 = pneg %p41
        $region14: #{tpu_custom_call.1} parent=11 // pred_check_branch
          %136 = sbr.rel (%p134) target = $region16
        $region15: #{tpu_custom_call.1} parent=11 // pred_region
          %s138 = ssub.s32 32, 32
          %139 = vsyncadd [#allocation5], %s138
          %142 = dma.hbm_to_smem %s0, 32, [#allocation2], [#allocation5]
        $region16: #{tpu_custom_call.1} parent=11 // pred_fallthru
          _
      $region12: #{tpu_custom_call.1} parent=5 // pred_fallthru
        _
      %p143 = scmp.lt.s32.totalorder %s20, 2
      // Predicated region
      $region17: #{tpu_custom_call.1} parent=5 // pred_check
        %p144 = pneg %p143
      $region18: #{tpu_custom_call.1} parent=5 // pred_check_branch
        %146 = sbr.rel (%p144) target = $region20
      $region19: #{tpu_custom_call.1} parent=5 // pred_region
        // Predicated region
        $region21: #{tpu_custom_call.1} parent=19 // pred_check
          %p147 = pneg %p61
        $region22: #{tpu_custom_call.1} parent=19 // pred_check_branch
          %149 = sbr.rel (%p147) target = $region24
        $region23: #{tpu_custom_call.1} parent=19 // pred_region
          %s150 = sand.u32 %s51, 1
          %s151 = scalar_lea.sflag [#allocation3], %s150
          %s152 = sand.u32 %s51, 1
          %s153 = smul.addr %s152, 24
          %s154 = scalar_lea.vmem [#allocation6], %s153
          %s156 = ssub.s32 384, 384
          %157 = vsyncadd %s151, %s156
          %s158 = smul.addr %s20, 128
          %s159 = scalar_lea.hbm %s1, %s158
          %s160 = sshll.u32 %s154, 4
          %s161 = int_to_ptr.vmem [resolvable:$true] %s160
          %166 = dma.hbm_to_vmem [thread:$0]  %s159, 384, %s161, %s151, 256, 128, 8
        $region24: #{tpu_custom_call.1} parent=19 // pred_fallthru
          _
      $region20: #{tpu_custom_call.1} parent=5 // pred_fallthru
        _
      %p167 = scmp.le.s32.totalorder 1, %s20
      %p168 = scmp.lt.s32.totalorder %s20, 3
      %p169 = pnand %p167, %p168
      %p170 = pneg %p169
      // Predicated region
      $region25: #{tpu_custom_call.1} parent=5 // pred_check
        _
      $region26: #{tpu_custom_call.1} parent=5 // pred_check_branch
        %172 = sbr.rel (%p169) target = $region28
      $region27: #{tpu_custom_call.1} parent=5 // pred_region
        %s173 = ssub.s32 %s20, 1
        // Predicated region
        $region29: #{tpu_custom_call.1} parent=27 // pred_check
          %p174 = pneg %p41
        $region30: #{tpu_custom_call.1} parent=27 // pred_check_branch
          %176 = sbr.rel (%p174) target = $region32
        $region31: #{tpu_custom_call.1} parent=27 // pred_region
          %177 = dma.done [#allocation5], 32
        $region32: #{tpu_custom_call.1} parent=27 // pred_fallthru
          _
        %s178 = sand.u32 %s54, 1
        %s179 = scalar_lea.sflag [#allocation3], %s178
        %s180 = sand.u32 %s54, 1
        %s181 = smul.addr %s180, 24
        %s182 = scalar_lea.vmem [#allocation6], %s181
        // Predicated region
        $region33: #{tpu_custom_call.1} parent=27 // pred_check
          %p183 = pneg %p67
        $region34: #{tpu_custom_call.1} parent=27 // pred_check_branch
          %185 = sbr.rel (%p183) target = $region36
        $region35: #{tpu_custom_call.1} parent=27 // pred_region
          %186 = dma.done %s179, 384
        $region36: #{tpu_custom_call.1} parent=27 // pred_fallthru
          _
        %187 = sfence
        %p188 = pneg %p41
        %p189 = pneg %p38
        %s190 = sand.u32 %s54, 1
        %s191 = scalar_lea.sflag [#allocation3], %s190
        %s192 = sand.u32 %s54, 1
        %s193 = smul.addr %s192, 24
        %s194 = scalar_lea.vmem [#allocation6], %s193
        %p195 = pneg %p67
        %p196 = pneg %p64
        %p197 = pneg %p93
        %p198 = pneg %p90
        %s199 = sand.u32 %s80, 1
        %s200 = scalar_lea.sflag [#allocation4], %s199
        %s201 = sand.u32 %s80, 1
        %s202 = smul.addr %s201, 24
        %s203 = scalar_lea.vmem [#allocation7], %s202
        %p204 = pneg %p119
        %p205 = pneg %p116
        %s206 = sand.u32 %s106, 1
        %s207 = scalar_lea.sflag [#allocation9], %s206
        %s208 = sand.u32 %s106, 1
        %s209 = smul.addr %s208, 40
        %s210 = scalar_lea.vmem [#allocation8], %s209
        %v211 = vld [vmem:[%s182] sm:$0xff]
        %s212 = scalar_lea.vmem %s182, 8 [#allocation6]
        %v213 = vld [vmem:[%s212] sm:$0xff]
        %s214 = scalar_lea.vmem %s182, 16 [#allocation6]
        %v215 = vld [vmem:[%s214] sm:$0xff]
        %s216 = sld [smem:[#allocation2]]
        %v217 = vstv %s216
        %v218 = vmul.f32 %v211, %v217
        %s219 = sld [smem:[#allocation2 + $0x1]]
        %v220 = vstv %s219
        %v221 = vmul.f32 %v213, %v220
        %v222 = vadd.f32 %v218, %v221
        %s223 = sld [smem:[#allocation2 + $0x2]]
        %v224 = vstv %s223
        %v225 = vmul.f32 %v215, %v224
        %v226 = vadd.f32 %v222, %v225
        %s227 = sld [smem:[#allocation2 + $0xc]]
        %v228 = vstv %s227
        %v229 = vadd.f32 %v226, %v228
        %v230 = vmul.f32 %v229, 0.01
        %v231 = vmax.f32 %v229, %v230
        %s232 = sld [smem:[#allocation2 + $0x3]]
        %v233 = vstv %s232
        %v234 = vmul.f32 %v211, %v233
        %s235 = sld [smem:[#allocation2 + $0x4]]
        %v236 = vstv %s235
        %v237 = vmul.f32 %v213, %v236
        %v238 = vadd.f32 %v234, %v237
        %s239 = sld [smem:[#allocation2 + $0x5]]
        %v240 = vstv %s239
        %v241 = vmul.f32 %v215, %v240
        %v242 = vadd.f32 %v238, %v241
        %s243 = sld [smem:[#allocation2 + $0xd]]
        %v244 = vstv %s243
        %v245 = vadd.f32 %v242, %v244
        %v246 = vmul.f32 %v245, 0.01
        %v247 = vmax.f32 %v245, %v246
        %s248 = sld [smem:[#allocation2 + $0x6]]
        %v249 = vstv %s248
        %v250 = vmul.f32 %v211, %v249
        %s251 = sld [smem:[#allocation2 + $0x7]]
        %v252 = vstv %s251
        %v253 = vmul.f32 %v213, %v252
        %v254 = vadd.f32 %v250, %v253
        %s255 = sld [smem:[#allocation2 + $0x8]]
        %v256 = vstv %s255
        %v257 = vmul.f32 %v215, %v256
        %v258 = vadd.f32 %v254, %v257
        %s259 = sld [smem:[#allocation2 + $0xe]]
        %v260 = vstv %s259
        %v261 = vadd.f32 %v258, %v260
        %v262 = vmul.f32 %v261, 0.01
        %v263 = vmax.f32 %v261, %v262
        %s264 = sld [smem:[#allocation2 + $0x9]]
        %v265 = vstv %s264
        %v266 = vmul.f32 %v211, %v265
        %s267 = sld [smem:[#allocation2 + $0xa]]
        %v268 = vstv %s267
        %v269 = vmul.f32 %v213, %v268
        %v270 = vadd.f32 %v266, %v269
        %s271 = sld [smem:[#allocation2 + $0xb]]
        %v272 = vstv %s271
        %v273 = vmul.f32 %v215, %v272
        %v274 = vadd.f32 %v270, %v273
        %s275 = sld [smem:[#allocation2 + $0xf]]
        %v276 = vstv %s275
        %v277 = vadd.f32 %v274, %v276
        %v278 = vmul.f32 %v277, 0.01
        %v279 = vmax.f32 %v277, %v278
        %s280 = sld [smem:[#allocation2 + $0x10]]
        %v281 = vstv %s280
        %v282 = vmul.f32 %v231, %v281
        %s283 = sld [smem:[#allocation2 + $0x11]]
        %v284 = vstv %s283
        %v285 = vmul.f32 %v247, %v284
        %v286 = vadd.f32 %v282, %v285
        %s287 = sld [smem:[#allocation2 + $0x12]]
        %v288 = vstv %s287
        %v289 = vmul.f32 %v263, %v288
        %v290 = vadd.f32 %v286, %v289
        %s291 = sld [smem:[#allocation2 + $0x13]]
        %v292 = vstv %s291
        %v293 = vmul.f32 %v279, %v292
        %v294 = vadd.f32 %v290, %v293
        %s295 = sld [smem:[#allocation2 + $0x24]]
        %v296 = vstv %s295
        %v297 = vadd.f32 %v294, %v296
        %v298 = vmul.f32 %v297, 0.01
        %v299 = vmax.f32 %v297, %v298
        %s300 = sld [smem:[#allocation2 + $0x14]]
        %v301 = vstv %s300
        %v302 = vmul.f32 %v231, %v301
        %s303 = sld [smem:[#allocation2 + $0x15]]
        %v304 = vstv %s303
        %v305 = vmul.f32 %v247, %v304
        %v306 = vadd.f32 %v302, %v305
        %s307 = sld [smem:[#allocation2 + $0x16]]
        %v308 = vstv %s307
        %v309 = vmul.f32 %v263, %v308
        %v310 = vadd.f32 %v306, %v309
        %s311 = sld [smem:[#allocation2 + $0x17]]
        %v312 = vstv %s311
        %v313 = vmul.f32 %v279, %v312
        %v314 = vadd.f32 %v310, %v313
        %s315 = sld [smem:[#allocation2 + $0x25]]
        %v316 = vstv %s315
        %v317 = vadd.f32 %v314, %v316
        %v318 = vmul.f32 %v317, 0.01
        %v319 = vmax.f32 %v317, %v318
        %s320 = sld [smem:[#allocation2 + $0x18]]
        %v321 = vstv %s320
        %v322 = vmul.f32 %v231, %v321
        %s323 = sld [smem:[#allocation2 + $0x19]]
        %v324 = vstv %s323
        %v325 = vmul.f32 %v247, %v324
        %v326 = vadd.f32 %v322, %v325
        %s327 = sld [smem:[#allocation2 + $0x1a]]
        %v328 = vstv %s327
        %v329 = vmul.f32 %v263, %v328
        %v330 = vadd.f32 %v326, %v329
        %s331 = sld [smem:[#allocation2 + $0x1b]]
        %v332 = vstv %s331
        %v333 = vmul.f32 %v279, %v332
        %v334 = vadd.f32 %v330, %v333
        %s335 = sld [smem:[#allocation2 + $0x26]]
        %v336 = vstv %s335
        %v337 = vadd.f32 %v334, %v336
        %v338 = vmul.f32 %v337, 0.01
        %v339 = vmax.f32 %v337, %v338
        %s340 = sld [smem:[#allocation2 + $0x1c]]
        %v341 = vstv %s340
        %v342 = vmul.f32 %v231, %v341
        %s343 = sld [smem:[#allocation2 + $0x1d]]
        %v344 = vstv %s343
        %v345 = vmul.f32 %v247, %v344
        %v346 = vadd.f32 %v342, %v345
        %s347 = sld [smem:[#allocation2 + $0x1e]]
        %v348 = vstv %s347
        %v349 = vmul.f32 %v263, %v348
        %v350 = vadd.f32 %v346, %v349
        %s351 = sld [smem:[#allocation2 + $0x1f]]
        %v352 = vstv %s351
        %v353 = vmul.f32 %v279, %v352
        %v354 = vadd.f32 %v350, %v353
        %s355 = sld [smem:[#allocation2 + $0x27]]
        %v356 = vstv %s355
        %v357 = vadd.f32 %v354, %v356
        %v358 = vmul.f32 %v357, 0.01
        %v359 = vmax.f32 %v357, %v358
        %s360 = sld [smem:[#allocation2 + $0x20]]
        %v361 = vstv %s360
        %v362 = vmul.f32 %v231, %v361
        %s363 = sld [smem:[#allocation2 + $0x21]]
        %v364 = vstv %s363
        %v365 = vmul.f32 %v247, %v364
        %v366 = vadd.f32 %v362, %v365
        %s367 = sld [smem:[#allocation2 + $0x22]]
        %v368 = vstv %s367
        %v369 = vmul.f32 %v263, %v368
        %v370 = vadd.f32 %v366, %v369
        %s371 = sld [smem:[#allocation2 + $0x23]]
        %v372 = vstv %s371
        %v373 = vmul.f32 %v279, %v372
        %v374 = vadd.f32 %v370, %v373
        %s375 = sld [smem:[#allocation2 + $0x28]]
        %v376 = vstv %s375
        %v377 = vadd.f32 %v374, %v376
        %v378 = vmul.f32 %v377, 0.01
        %v379 = vmax.f32 %v377, %v378
        %s380 = sld [smem:[#allocation2 + $0x29]]
        %v381 = vstv %s380
        %v382 = vmul.f32 %v299, %v381
        %s383 = sld [smem:[#allocation2 + $0x2a]]
        %v384 = vstv %s383
        %v385 = vmul.f32 %v319, %v384
        %v386 = vadd.f32 %v382, %v385
        %s387 = sld [smem:[#allocation2 + $0x2b]]
        %v388 = vstv %s387
        %v389 = vmul.f32 %v339, %v388
        %v390 = vadd.f32 %v386, %v389
        %s391 = sld [smem:[#allocation2 + $0x2c]]
        %v392 = vstv %s391
        %v393 = vmul.f32 %v359, %v392
        %v394 = vadd.f32 %v390, %v393
        %s395 = sld [smem:[#allocation2 + $0x2d]]
        %v396 = vstv %s395
        %v397 = vmul.f32 %v379, %v396
        %v398 = vadd.f32 %v394, %v397
        %s399 = sld [smem:[#allocation2 + $0x42]]
        %v400 = vstv %s399
        %v401 = vadd.f32 %v398, %v400
        %s402 = sld [smem:[#allocation2 + $0x2e]]
        %v403 = vstv %s402
        %v404 = vmul.f32 %v299, %v403
        %s405 = sld [smem:[#allocation2 + $0x2f]]
        %v406 = vstv %s405
        %v407 = vmul.f32 %v319, %v406
        %v408 = vadd.f32 %v404, %v407
        %s409 = sld [smem:[#allocation2 + $0x30]]
        %v410 = vstv %s409
        %v411 = vmul.f32 %v339, %v410
        %v412 = vadd.f32 %v408, %v411
        %s413 = sld [smem:[#allocation2 + $0x31]]
        %v414 = vstv %s413
        %v415 = vmul.f32 %v359, %v414
        %v416 = vadd.f32 %v412, %v415
        %s417 = sld [smem:[#allocation2 + $0x32]]
        %v418 = vstv %s417
        %v419 = vmul.f32 %v379, %v418
        %v420 = vadd.f32 %v416, %v419
        %s421 = sld [smem:[#allocation2 + $0x43]]
        %v422 = vstv %s421
        %v423 = vadd.f32 %v420, %v422
        %s424 = sld [smem:[#allocation2 + $0x33]]
        %v425 = vstv %s424
        %v426 = vmul.f32 %v299, %v425
        %s427 = sld [smem:[#allocation2 + $0x34]]
        %v428 = vstv %s427
        %v429 = vmul.f32 %v319, %v428
        %v430 = vadd.f32 %v426, %v429
        %s431 = sld [smem:[#allocation2 + $0x35]]
        %v432 = vstv %s431
        %v433 = vmul.f32 %v339, %v432
        %v434 = vadd.f32 %v430, %v433
        %s435 = sld [smem:[#allocation2 + $0x36]]
        %v436 = vstv %s435
        %v437 = vmul.f32 %v359, %v436
        %v438 = vadd.f32 %v434, %v437
        %s439 = sld [smem:[#allocation2 + $0x37]]
        %v440 = vstv %s439
        %v441 = vmul.f32 %v379, %v440
        %v442 = vadd.f32 %v438, %v441
        %s443 = sld [smem:[#allocation2 + $0x44]]
        %v444 = vstv %s443
        %v445 = vadd.f32 %v442, %v444
        %s446 = sld [smem:[#allocation2 + $0x38]]
        %v447 = vstv %s446
        %v448 = vmul.f32 %v299, %v447
        %s449 = sld [smem:[#allocation2 + $0x39]]
        %v450 = vstv %s449
        %v451 = vmul.f32 %v319, %v450
        %v452 = vadd.f32 %v448, %v451
        %s453 = sld [smem:[#allocation2 + $0x3a]]
        %v454 = vstv %s453
        %v455 = vmul.f32 %v339, %v454
        %v456 = vadd.f32 %v452, %v455
        %s457 = sld [smem:[#allocation2 + $0x3b]]
        %v458 = vstv %s457
        %v459 = vmul.f32 %v359, %v458
        %v460 = vadd.f32 %v456, %v459
        %s461 = sld [smem:[#allocation2 + $0x3c]]
        %v462 = vstv %s461
        %v463 = vmul.f32 %v379, %v462
        %v464 = vadd.f32 %v460, %v463
        %s465 = sld [smem:[#allocation2 + $0x45]]
        %v466 = vstv %s465
        %v467 = vadd.f32 %v464, %v466
        %s468 = sld [smem:[#allocation2 + $0x3d]]
        %v469 = vstv %s468
        %v470 = vmul.f32 %v299, %v469
        %s471 = sld [smem:[#allocation2 + $0x3e]]
        %v472 = vstv %s471
        %v473 = vmul.f32 %v319, %v472
        %v474 = vadd.f32 %v470, %v473
        %s475 = sld [smem:[#allocation2 + $0x3f]]
        %v476 = vstv %s475
        %v477 = vmul.f32 %v339, %v476
        %v478 = vadd.f32 %v474, %v477
        %s479 = sld [smem:[#allocation2 + $0x40]]
        %v480 = vstv %s479
        %v481 = vmul.f32 %v359, %v480
        %v482 = vadd.f32 %v478, %v481
        %s483 = sld [smem:[#allocation2 + $0x41]]
        %v484 = vstv %s483
        %v485 = vmul.f32 %v379, %v484
        %v486 = vadd.f32 %v482, %v485
        %s487 = sld [smem:[#allocation2 + $0x46]]
        %v488 = vstv %s487
        %v489 = vadd.f32 %v486, %v488
        %s490 = sld [smem:[#allocation2 + $0x47]]
        %v491 = vstv %s490
        %v492 = vmul.f32 %v401, %v491
        %s493 = sld [smem:[#allocation2 + $0x48]]
        %v494 = vstv %s493
        %v495 = vmul.f32 %v423, %v494
        %v496 = vadd.f32 %v492, %v495
        %s497 = sld [smem:[#allocation2 + $0x49]]
        %v498 = vstv %s497
        %v499 = vmul.f32 %v445, %v498
        %v500 = vadd.f32 %v496, %v499
        %s501 = sld [smem:[#allocation2 + $0x4a]]
        %v502 = vstv %s501
        %v503 = vmul.f32 %v467, %v502
        %v504 = vadd.f32 %v500, %v503
        %s505 = sld [smem:[#allocation2 + $0x4b]]
        %v506 = vstv %s505
        %v507 = vmul.f32 %v489, %v506
        %v508 = vadd.f32 %v504, %v507
        %s509 = sld [smem:[#allocation2 + $0x60]]
        %v510 = vstv %s509
        %v511 = vadd.f32 %v508, %v510
        %v512 = vmul.f32 %v511, 0.01
        %v513 = vmax.f32 %v511, %v512
        %s514 = sld [smem:[#allocation2 + $0x4c]]
        %v515 = vstv %s514
        %v516 = vmul.f32 %v401, %v515
        %s517 = sld [smem:[#allocation2 + $0x4d]]
        %v518 = vstv %s517
        %v519 = vmul.f32 %v423, %v518
        %v520 = vadd.f32 %v516, %v519
        %s521 = sld [smem:[#allocation2 + $0x4e]]
        %v522 = vstv %s521
        %v523 = vmul.f32 %v445, %v522
        %v524 = vadd.f32 %v520, %v523
        %s525 = sld [smem:[#allocation2 + $0x4f]]
        %v526 = vstv %s525
        %v527 = vmul.f32 %v467, %v526
        %v528 = vadd.f32 %v524, %v527
        %s529 = sld [smem:[#allocation2 + $0x50]]
        %v530 = vstv %s529
        %v531 = vmul.f32 %v489, %v530
        %v532 = vadd.f32 %v528, %v531
        %s533 = sld [smem:[#allocation2 + $0x61]]
        %v534 = vstv %s533
        %v535 = vadd.f32 %v532, %v534
        %v536 = vmul.f32 %v535, 0.01
        %v537 = vmax.f32 %v535, %v536
        %s538 = sld [smem:[#allocation2 + $0x51]]
        %v539 = vstv %s538
        %v540 = vmul.f32 %v401, %v539
        %s541 = sld [smem:[#allocation2 + $0x52]]
        %v542 = vstv %s541
        %v543 = vmul.f32 %v423, %v542
        %v544 = vadd.f32 %v540, %v543
        %s545 = sld [smem:[#allocation2 + $0x53]]
        %v546 = vstv %s545
        %v547 = vmul.f32 %v445, %v546
        %v548 = vadd.f32 %v544, %v547
        %s549 = sld [smem:[#allocation2 + $0x54]]
        %v550 = vstv %s549
        %v551 = vmul.f32 %v467, %v550
        %v552 = vadd.f32 %v548, %v551
        %s553 = sld [smem:[#allocation2 + $0x55]]
        %v554 = vstv %s553
        %v555 = vmul.f32 %v489, %v554
        %v556 = vadd.f32 %v552, %v555
        %s557 = sld [smem:[#allocation2 + $0x62]]
        %v558 = vstv %s557
        %v559 = vadd.f32 %v556, %v558
        %v560 = vmul.f32 %v559, 0.01
        %v561 = vmax.f32 %v559, %v560
        %s562 = sld [smem:[#allocation2 + $0x56]]
        %v563 = vstv %s562
        %v564 = vmul.f32 %v401, %v563
        %s565 = sld [smem:[#allocation2 + $0x57]]
        %v566 = vstv %s565
        %v567 = vmul.f32 %v423, %v566
        %v568 = vadd.f32 %v564, %v567
        %s569 = sld [smem:[#allocation2 + $0x58]]
        %v570 = vstv %s569
        %v571 = vmul.f32 %v445, %v570
        %v572 = vadd.f32 %v568, %v571
        %s573 = sld [smem:[#allocation2 + $0x59]]
        %v574 = vstv %s573
        %v575 = vmul.f32 %v467, %v574
        %v576 = vadd.f32 %v572, %v575
        %s577 = sld [smem:[#allocation2 + $0x5a]]
        %v578 = vstv %s577
        %v579 = vmul.f32 %v489, %v578
        %v580 = vadd.f32 %v576, %v579
        %s581 = sld [smem:[#allocation2 + $0x63]]
        %v582 = vstv %s581
        %v583 = vadd.f32 %v580, %v582
        %v584 = vmul.f32 %v583, 0.01
        %v585 = vmax.f32 %v583, %v584
        %s586 = sld [smem:[#allocation2 + $0x5b]]
        %v587 = vstv %s586
        %v588 = vmul.f32 %v401, %v587
        %s589 = sld [smem:[#allocation2 + $0x5c]]
        %v590 = vstv %s589
        %v591 = vmul.f32 %v423, %v590
        %v592 = vadd.f32 %v588, %v591
        %s593 = sld [smem:[#allocation2 + $0x5d]]
        %v594 = vstv %s593
        %v595 = vmul.f32 %v445, %v594
        %v596 = vadd.f32 %v592, %v595
        %s597 = sld [smem:[#allocation2 + $0x5e]]
        %v598 = vstv %s597
        %v599 = vmul.f32 %v467, %v598
        %v600 = vadd.f32 %v596, %v599
        %s601 = sld [smem:[#allocation2 + $0x5f]]
        %v602 = vstv %s601
        %v603 = vmul.f32 %v489, %v602
        %v604 = vadd.f32 %v600, %v603
        %s605 = sld [smem:[#allocation2 + $0x64]]
        %v606 = vstv %s605
        %v607 = vadd.f32 %v604, %v606
        %v608 = vmul.f32 %v607, 0.01
        %v609 = vmax.f32 %v607, %v608
        %s610 = sld [smem:[#allocation2 + $0x65]]
        %v611 = vstv %s610
        %v612 = vmul.f32 %v513, %v611
        %s613 = sld [smem:[#allocation2 + $0x66]]
        %v614 = vstv %s613
        %v615 = vmul.f32 %v537, %v614
        %v616 = vadd.f32 %v612, %v615
        %s617 = sld [smem:[#allocation2 + $0x67]]
        %v618 = vstv %s617
        %v619 = vmul.f32 %v561, %v618
        %v620 = vadd.f32 %v616, %v619
        %s621 = sld [smem:[#allocation2 + $0x68]]
        %v622 = vstv %s621
        %v623 = vmul.f32 %v585, %v622
        %v624 = vadd.f32 %v620, %v623
        %s625 = sld [smem:[#allocation2 + $0x69]]
        %v626 = vstv %s625
        %v627 = vmul.f32 %v609, %v626
        %v628 = vadd.f32 %v624, %v627
        %s629 = sld [smem:[#allocation2 + $0x79]]
        %v630 = vstv %s629
        %v631 = vadd.f32 %v628, %v630
        %v632 = vmul.f32 %v631, 0.01
        %v633 = vmax.f32 %v631, %v632
        %s634 = sld [smem:[#allocation2 + $0x6a]]
        %v635 = vstv %s634
        %v636 = vmul.f32 %v513, %v635
        %s637 = sld [smem:[#allocation2 + $0x6b]]
        %v638 = vstv %s637
        %v639 = vmul.f32 %v537, %v638
        %v640 = vadd.f32 %v636, %v639
        %s641 = sld [smem:[#allocation2 + $0x6c]]
        %v642 = vstv %s641
        %v643 = vmul.f32 %v561, %v642
        %v644 = vadd.f32 %v640, %v643
        %s645 = sld [smem:[#allocation2 + $0x6d]]
        %v646 = vstv %s645
        %v647 = vmul.f32 %v585, %v646
        %v648 = vadd.f32 %v644, %v647
        %s649 = sld [smem:[#allocation2 + $0x6e]]
        %v650 = vstv %s649
        %v651 = vmul.f32 %v609, %v650
        %v652 = vadd.f32 %v648, %v651
        %s653 = sld [smem:[#allocation2 + $0x7a]]
        %v654 = vstv %s653
        %v655 = vadd.f32 %v652, %v654
        %v656 = vmul.f32 %v655, 0.01
        %v657 = vmax.f32 %v655, %v656
        %s658 = sld [smem:[#allocation2 + $0x6f]]
        %v659 = vstv %s658
        %v660 = vmul.f32 %v513, %v659
        %s661 = sld [smem:[#allocation2 + $0x70]]
        %v662 = vstv %s661
        %v663 = vmul.f32 %v537, %v662
        %v664 = vadd.f32 %v660, %v663
        %s665 = sld [smem:[#allocation2 + $0x71]]
        %v666 = vstv %s665
        %v667 = vmul.f32 %v561, %v666
        %v668 = vadd.f32 %v664, %v667
        %s669 = sld [smem:[#allocation2 + $0x72]]
        %v670 = vstv %s669
        %v671 = vmul.f32 %v585, %v670
        %v672 = vadd.f32 %v668, %v671
        %s673 = sld [smem:[#allocation2 + $0x73]]
        %v674 = vstv %s673
        %v675 = vmul.f32 %v609, %v674
        %v676 = vadd.f32 %v672, %v675
        %s677 = sld [smem:[#allocation2 + $0x7b]]
        %v678 = vstv %s677
        %v679 = vadd.f32 %v676, %v678
        %v680 = vmul.f32 %v679, 0.01
        %v681 = vmax.f32 %v679, %v680
        %s682 = sld [smem:[#allocation2 + $0x74]]
        %v683 = vstv %s682
        %v684 = vmul.f32 %v513, %v683
        %s685 = sld [smem:[#allocation2 + $0x75]]
        %v686 = vstv %s685
        %v687 = vmul.f32 %v537, %v686
        %v688 = vadd.f32 %v684, %v687
        %s689 = sld [smem:[#allocation2 + $0x76]]
        %v690 = vstv %s689
        %v691 = vmul.f32 %v561, %v690
        %v692 = vadd.f32 %v688, %v691
        %s693 = sld [smem:[#allocation2 + $0x77]]
        %v694 = vstv %s693
        %v695 = vmul.f32 %v585, %v694
        %v696 = vadd.f32 %v692, %v695
        %s697 = sld [smem:[#allocation2 + $0x78]]
        %v698 = vstv %s697
        %v699 = vmul.f32 %v609, %v698
        %v700 = vadd.f32 %v696, %v699
        %s701 = sld [smem:[#allocation2 + $0x7c]]
        %v702 = vstv %s701
        %v703 = vadd.f32 %v700, %v702
        %v704 = vmul.f32 %v703, 0.01
        %v705 = vmax.f32 %v703, %v704
        %s706 = sld [smem:[#allocation2 + $0x7d]]
        %v707 = vstv %s706
        %v708 = vmul.f32 %v633, %v707
        %s709 = sld [smem:[#allocation2 + $0x7e]]
        %v710 = vstv %s709
        %v711 = vmul.f32 %v657, %v710
        %v712 = vadd.f32 %v708, %v711
        %s713 = sld [smem:[#allocation2 + $0x7f]]
        %v714 = vstv %s713
        %v715 = vmul.f32 %v681, %v714
        %v716 = vadd.f32 %v712, %v715
        %s717 = sld [smem:[#allocation2 + $0x80]]
        %v718 = vstv %s717
        %v719 = vmul.f32 %v705, %v718
        %v720 = vadd.f32 %v716, %v719
        %s721 = sld [smem:[#allocation2 + $0x89]]
        %v722 = vstv %s721
        %v723 = vadd.f32 %v720, %v722
        %s724 = sld [smem:[#allocation2 + $0x81]]
        %v725 = vstv %s724
        %v726 = vmul.f32 %v633, %v725
        %s727 = sld [smem:[#allocation2 + $0x82]]
        %v728 = vstv %s727
        %v729 = vmul.f32 %v657, %v728
        %v730 = vadd.f32 %v726, %v729
        %s731 = sld [smem:[#allocation2 + $0x83]]
        %v732 = vstv %s731
        %v733 = vmul.f32 %v681, %v732
        %v734 = vadd.f32 %v730, %v733
        %s735 = sld [smem:[#allocation2 + $0x84]]
        %v736 = vstv %s735
        %v737 = vmul.f32 %v705, %v736
        %v738 = vadd.f32 %v734, %v737
        %s739 = sld [smem:[#allocation2 + $0x8a]]
        %v740 = vstv %s739
        %v741 = vadd.f32 %v738, %v740
        %s742 = sld [smem:[#allocation2 + $0x85]]
        %v743 = vstv %s742
        %v744 = vmul.f32 %v633, %v743
        %s745 = sld [smem:[#allocation2 + $0x86]]
        %v746 = vstv %s745
        %v747 = vmul.f32 %v657, %v746
        %v748 = vadd.f32 %v744, %v747
        %s749 = sld [smem:[#allocation2 + $0x87]]
        %v750 = vstv %s749
        %v751 = vmul.f32 %v681, %v750
        %v752 = vadd.f32 %v748, %v751
        %s753 = sld [smem:[#allocation2 + $0x88]]
        %v754 = vstv %s753
        %v755 = vmul.f32 %v705, %v754
        %v756 = vadd.f32 %v752, %v755
        %s757 = sld [smem:[#allocation2 + $0x8b]]
        %v758 = vstv %s757
        %v759 = vadd.f32 %v756, %v758
        %760 = vst [vmem:[%s210] sm:$0xff] %v401
        %s761 = scalar_lea.vmem %s210, 8 [#allocation8]
        %762 = vst [vmem:[%s761] sm:$0xff] %v423
        %s763 = scalar_lea.vmem %s210, 16 [#allocation8]
        %764 = vst [vmem:[%s763] sm:$0xff] %v445
        %s765 = scalar_lea.vmem %s210, 24 [#allocation8]
        %766 = vst [vmem:[%s765] sm:$0xff] %v467
        %s767 = scalar_lea.vmem %s210, 32 [#allocation8]
        %768 = vst [vmem:[%s767] sm:$0xff] %v489
        %769 = vst [vmem:[%s203] sm:$0xff] %v723
        %s770 = scalar_lea.vmem %s203, 8 [#allocation7]
        %771 = vst [vmem:[%s770] sm:$0xff] %v741
        %s772 = scalar_lea.vmem %s203, 16 [#allocation7]
        %773 = vst [vmem:[%s772] sm:$0xff] %v759
        %s774 = sand.u32 %s80, 1
        %s775 = scalar_lea.sflag [#allocation4], %s774
        %s776 = sand.u32 %s80, 1
        %s777 = smul.addr %s776, 24
        %s778 = scalar_lea.vmem [#allocation7], %s777
        %s779 = sand.u32 %s106, 1
        %s780 = scalar_lea.sflag [#allocation9], %s779
        %s781 = sand.u32 %s106, 1
        %s782 = smul.addr %s781, 40
        %s783 = scalar_lea.vmem [#allocation8], %s782
        // Predicated region
        $region37: #{tpu_custom_call.1} parent=27 // pred_check
          %p784 = pneg %p90
        $region38: #{tpu_custom_call.1} parent=27 // pred_check_branch
          %786 = sbr.rel (%p784) target = $region40
        $region39: #{tpu_custom_call.1} parent=27 // pred_region
          %s788 = ssub.s32 384, 384
          %789 = vsyncadd %s775, %s788
          %s790 = smul.addr %s25, 128
          %s791 = scalar_lea.hbm %s2, %s790
          %s792 = sshll.u32 %s778, 4
          %s793 = int_to_ptr.vmem [resolvable:$true] %s792
          %798 = dma.vmem_to_hbm [thread:$0]  %s793, 384, %s791, %s775, 128, 256, 8
        $region40: #{tpu_custom_call.1} parent=27 // pred_fallthru
          _
        // Predicated region
        $region41: #{tpu_custom_call.1} parent=27 // pred_check
          %p799 = pneg %p116
        $region42: #{tpu_custom_call.1} parent=27 // pred_check_branch
          %801 = sbr.rel (%p799) target = $region44
        $region43: #{tpu_custom_call.1} parent=27 // pred_region
          %s803 = ssub.s32 640, 640
          %804 = vsyncadd %s780, %s803
          %s805 = smul.addr %s25, 128
          %s806 = scalar_lea.hbm %s3, %s805
          %s807 = sshll.u32 %s783, 4
          %s808 = int_to_ptr.vmem [resolvable:$true] %s807
          %813 = dma.vmem_to_hbm [thread:$0]  %s808, 640, %s806, %s780, 128, 256, 8
        $region44: #{tpu_custom_call.1} parent=27 // pred_fallthru
          _
      $region28: #{tpu_custom_call.1} parent=5 // pred_fallthru
        _
      %p814 = scmp.le.s32.totalorder 2, %s20
      // Predicated region
      $region45: #{tpu_custom_call.1} parent=5 // pred_check
        %p815 = pneg %p814
      $region46: #{tpu_custom_call.1} parent=5 // pred_check_branch
        %817 = sbr.rel (%p815) target = $region48
      $region47: #{tpu_custom_call.1} parent=5 // pred_region
        %s818 = ssub.s32 %s20, 2
        // Predicated region
        $region49: #{tpu_custom_call.1} parent=47 // pred_check
          %p819 = pneg %p96
        $region50: #{tpu_custom_call.1} parent=47 // pred_check_branch
          %821 = sbr.rel (%p819) target = $region52
        $region51: #{tpu_custom_call.1} parent=47 // pred_region
          %s822 = sand.u32 %s81, 1
          %s823 = scalar_lea.sflag [#allocation4], %s822
          %s824 = sand.u32 %s81, 1
          %s825 = smul.addr %s824, 24
          %s826 = scalar_lea.vmem [#allocation7], %s825
          %827 = dma.done %s823, 384
        $region52: #{tpu_custom_call.1} parent=47 // pred_fallthru
          _
        // Predicated region
        $region53: #{tpu_custom_call.1} parent=47 // pred_check
          %p828 = pneg %p122
        $region54: #{tpu_custom_call.1} parent=47 // pred_check_branch
          %830 = sbr.rel (%p828) target = $region56
        $region55: #{tpu_custom_call.1} parent=47 // pred_region
          %s831 = sand.u32 %s107, 1
          %s832 = scalar_lea.sflag [#allocation9], %s831
          %s833 = sand.u32 %s107, 1
          %s834 = smul.addr %s833, 40
          %s835 = scalar_lea.vmem [#allocation8], %s834
          %836 = dma.done %s832, 640
        $region56: #{tpu_custom_call.1} parent=47 // pred_fallthru
          _
      $region48: #{tpu_custom_call.1} parent=5 // pred_fallthru
        _
    $region6: #{tpu_custom_call.1} parent=1 // loop_footer
      %s24 = sadd.s32 1, %s20
    $region7: #{tpu_custom_call.1} parent=1 // loop_footer_branch
      %19 = sbr.rel target = $region3
    $region8: #{tpu_custom_call.1} parent=1 // loop_exit
      _
    %837 = vsyncpa [#allocation3], 1
    %s838 = scalar_lea.sflag [#allocation3], 1
    %839 = vsyncpa %s838, 1
    %840 = vsyncpa [#allocation4], 1
    %s841 = scalar_lea.sflag [#allocation4], 1
    %842 = vsyncpa %s841, 1
    %843 = vsyncpa [#allocation9], 1
    %s844 = scalar_lea.sflag [#allocation9], 1
    %845 = vsyncpa %s844, 1
    %846 = vsyncpa [#allocation5], 1
    %s847 = scalar_lea.sflag [#allocation5], 1
    %848 = vsyncpa %s847, 1

</llo_original>
